<compile_context>
chip_gen: v6e
topology: v6e:2x2x1
jax: 0.10.0
libtpu: 0.0.40
codegen_flags: <defaults>
</compile_context>

<pallas_src>
import math
import functools
import numpy as np

import jax
import jax.numpy as jnp
from jax import lax
from jax.experimental import pallas as pl
from jax.experimental.pallas import tpu as pltpu

# ---- synthetic (small) config ----
B = 2
S = 8
HC = 32            # context_config.hidden_size
N_HEADS = 4        # context_config.num_attention_heads
N_KV = 2           # context_config.num_key_value_heads
HEAD_DIM = HC // N_HEADS
N_GROUPS = N_HEADS // N_KV
HT = 64            # text_config.hidden_size
OUT_MIN = 2        # output_size_min (kept small for this synthetic demo)
OUT_MAX = 512      # context_config.max_position_embeddings
SCALE_PARAM = 0.01 # nn.Parameter(torch.tensor(0.01))

QD = N_HEADS * HEAD_DIM       # per-attention q width
KD = N_KV * HEAD_DIM          # per-attention kv width


# ======================================================================================
# Kernel 1: fused dual attention (size estimation + weighted pooling), per batch element.
#   outputs: dynamic output size (int32, (1,1,1) block) and sigmoid pooling weights (S,1).
# ======================================================================================
def _dual_attn_kernel(x_ref, wq_ref, wk_ref, wv_ref, wo_ref, scale_ref,
                      size_ref, wts_ref):
    x = x_ref[0]                                                      # (S, HC)
    # one wide projection per q/k/v covering both attentions (better MXU utilization)
    q = jnp.dot(x, wq_ref[...], preferred_element_type=jnp.float32)   # (S, 2*QD)
    k = jnp.dot(x, wk_ref[...], preferred_element_type=jnp.float32)   # (S, 2*KD)
    v = jnp.dot(x, wv_ref[...], preferred_element_type=jnp.float32)   # (S, 2*KD)

    inv_sqrt = 1.0 / math.sqrt(HEAD_DIM)
    o_heads = []
    for a in range(2):                       # a=0: size-estimation attn, a=1: pooling attn
        for h in range(N_HEADS):             # static unrolled head loop
            qo = (a * N_HEADS + h) * HEAD_DIM
            ko = (a * N_KV + h // N_GROUPS) * HEAD_DIM   # repeat_kv mapping
            qh = q[:, qo:qo + HEAD_DIM]
            kh = k[:, ko:ko + HEAD_DIM]
            vh = v[:, ko:ko + HEAD_DIM]
            s = lax.dot_general(qh, kh, (((1,), (1,)), ((), ())),
                                preferred_element_type=jnp.float32) * inv_sqrt  # (S, S)
            m = jnp.max(s, axis=-1, keepdims=True)
            e = jnp.exp(s - m)
            p = e / jnp.sum(e, axis=-1, keepdims=True)   # exact softmax (keeps size-int stable)
            o_heads.append(jnp.dot(p, vh, preferred_element_type=jnp.float32))  # (S, HD)

    # single o_proj dot for both attentions (block-diagonal weight), instead of 8 tiny dots
    o_all = jnp.concatenate(o_heads, axis=1)                           # (S, 2*QD)
    attn = jnp.dot(o_all, wo_ref[...], preferred_element_type=jnp.float32)  # (S, 2)
    sig = jax.nn.sigmoid(attn)                                         # (S, 2)

    # size-estimation path: sigmoid -> mean over seq -> * scale_param -> int size
    mean_size = jnp.mean(sig[:, 0:1], axis=0, keepdims=True)           # (1, 1)
    sz = mean_size * scale_ref[...] * float(OUT_MAX - OUT_MIN) + float(OUT_MIN)
    size_ref[0] = sz.astype(jnp.int32)                                 # trunc == torch .int()

    # weighted-pooling path: sigmoid weights, (S, 1) layout consumed directly by kernel 2
    wts_ref[0] = sig[:, 1:2]


def dual_attention(x, wq_cat, wk_cat, wv_cat, wo_cat, scale):
    return pl.pallas_call(
        _dual_attn_kernel,
        out_shape=(jax.ShapeDtypeStruct((B, 1, 1), jnp.int32),
                   jax.ShapeDtypeStruct((B, S, 1), jnp.float32)),
        grid=(B,),
        in_specs=[
            pl.BlockSpec((1, S, HC), lambda b: (b, 0, 0)),
            pl.BlockSpec((HC, 2 * QD), lambda b: (0, 0)),
            pl.BlockSpec((HC, 2 * KD), lambda b: (0, 0)),
            pl.BlockSpec((HC, 2 * KD), lambda b: (0, 0)),
            pl.BlockSpec((2 * QD, 2), lambda b: (0, 0)),
            pl.BlockSpec((1, 1), lambda b: (0, 0)),
        ],
        out_specs=(pl.BlockSpec((1, 1, 1), lambda b: (b, 0, 0)),
                   pl.BlockSpec((1, S, 1), lambda b: (b, 0, 0))),
        compiler_params=pltpu.CompilerParams(dimension_semantics=("parallel",)),
    )(x, wq_cat, wk_cat, wv_cat, wo_cat, scale)


# ======================================================================================
# Kernel 2: fused dynamic weighted average pooling + projector MLP, per batch element.
#   scalar-prefetched dynamic sizes; chunk mask built lane-dense as (S, L).
# ======================================================================================
def _pool_mlp_kernel(sizes_ref, x_ref, w_ref, w1_ref, b1_ref, w2_ref, b2_ref,
                     out_ref, *, L):
    b = pl.program_id(0)
    n = sizes_ref[b]                         # dynamic output size for this batch element
    x = x_ref[0]                             # (S, HC)
    w = w_ref[0]                             # (S, 1) sigmoid pooling weights (sublane axis)

    # chunk mask (S, L): seq positions on sublanes, output slots on lanes (lane-dense).
    # intervals = linspace(0, S, n+1).long(): chunk i = [floor(i*S/n), floor((i+1)*S/n)).
    # membership decided by exact integer compares:  i*S < (t+1)*n <= (i+1)*S.
    t = lax.broadcasted_iota(jnp.int32, (S, L), 0)       # seq position
    j = lax.broadcasted_iota(jnp.int32, (S, L), 1)       # output slot (right-aligned)
    i = j - (L - n)                                      # chunk index; <0 => padding slot
    u = (t + 1) * n
    chunk = (u > i * S) & (u <= (i + 1) * S)             # padding slots: (i+1)*S <= 0 < u

    wmat = jnp.where(chunk, w, 0.0)                      # (S, L)
    wsum = jnp.sum(wmat, axis=0, keepdims=True)          # (1, L)
    inv = pl.reciprocal(wsum + 1e-8, approx=True)        # EUP; empty chunk -> wmat col == 0
    wnorm = wmat * inv                                   # (S, L)
    pooled = lax.dot_general(wnorm, x, (((0,), (0,)), ((), ())),
                             preferred_element_type=jnp.float32)       # (L, HC)

    # projector MLP fused in: linear_1 -> gelu_pytorch_tanh -> linear_2
    h = jnp.dot(pooled, w1_ref[...], preferred_element_type=jnp.float32) + b1_ref[...]
    h = jax.nn.gelu(h, approximate=True)
    out_ref[0] = jnp.dot(h, w2_ref[...], preferred_element_type=jnp.float32) + b2_ref[...]


def pool_mlp(x, wts, sizes_dev, w1, b1, w2, b2, L):
    kernel = functools.partial(_pool_mlp_kernel, L=L)
    return pl.pallas_call(
        kernel,
        out_shape=jax.ShapeDtypeStruct((B, L, HT), jnp.float32),
        grid_spec=pltpu.PrefetchScalarGridSpec(
            num_scalar_prefetch=1,
            grid=(B,),
            in_specs=[
                pl.BlockSpec((1, S, HC), lambda b, sz: (b, 0, 0)),
                pl.BlockSpec((1, S, 1), lambda b, sz: (b, 0, 0)),
                pl.BlockSpec((HC, HT), lambda b, sz: (0, 0)),
                pl.BlockSpec((1, HT), lambda b, sz: (0, 0)),
                pl.BlockSpec((HT, HT), lambda b, sz: (0, 0)),
                pl.BlockSpec((1, HT), lambda b, sz: (0, 0)),
            ],
            out_specs=pl.BlockSpec((1, L, HT), lambda b, sz: (b, 0, 0)),
        ),
        compiler_params=pltpu.CompilerParams(dimension_semantics=("parallel",)),
    )(sizes_dev, x, wts, w1, b1, w2, b2)


# ---------------- fused-weight preparation (done once at parameter build time) ----------
def fuse_attention_weights(size_attn, pool_attn):
    wq_s, wk_s, wv_s, wo_s = size_attn
    wq_p, wk_p, wv_p, wo_p = pool_attn
    wq_cat = jnp.concatenate([wq_s, wq_p], axis=1)       # (HC, 2*QD)
    wk_cat = jnp.concatenate([wk_s, wk_p], axis=1)       # (HC, 2*KD)
    wv_cat = jnp.concatenate([wv_s, wv_p], axis=1)       # (HC, 2*KD)
    wo_cat = jnp.zeros((2 * QD, 2), jnp.float32)         # block-diagonal o_proj
    wo_cat = wo_cat.at[:QD, 0:1].set(wo_s)
    wo_cat = wo_cat.at[QD:, 1:2].set(wo_p)
    return {"wq_cat": wq_cat, "wk_cat": wk_cat, "wv_cat": wv_cat, "wo_cat": wo_cat}


# ---------------- full connector forward ----------------
def connector_forward(x, params):
    # one fused launch: both attentions + sigmoid/mean/scale/int + pooling weights
    sizes_out, wts = dual_attention(x, params["wq_cat"], params["wk_cat"],
                                    params["wv_cat"], params["wo_cat"], params["scale"])

    # TODO(synk): max_pooled_len is data-dependent (.item() in torch); unavoidable host
    # sync + per-L recompile.  A static L=OUT_MAX variant would remove it but changes the
    # returned padded shape.
    sizes_host = np.asarray(jax.device_get(sizes_out)).reshape(B)
    L = int(sizes_host.max())
    sizes_dev = jnp.asarray(sizes_host, jnp.int32)

    # one fused launch: dynamic pooling + projector MLP
    h = pool_mlp(x, wts, sizes_dev, params["w1"], params["b1"],
                 params["w2"], params["b2"], L)

    attention_mask = jnp.asarray(np.arange(L)[None, :] >= (L - sizes_host[:, None]))
    return h, attention_mask, sizes_host


# ---------------- pure-JAX/numpy reference (mirrors the torch code) ----------------
def ref_forward(x, params):
    def ref_attn(x, wq, wk, wv, wo):
        q = (x @ wq).reshape(B, S, N_HEADS, HEAD_DIM).transpose(0, 2, 1, 3)
        k = (x @ wk).reshape(B, S, N_KV, HEAD_DIM).transpose(0, 2, 1, 3)
        v = (x @ wv).reshape(B, S, N_KV, HEAD_DIM).transpose(0, 2, 1, 3)
        k = jnp.repeat(k, N_GROUPS, axis=1)
        v = jnp.repeat(v, N_GROUPS, axis=1)
        s = jnp.einsum('bhqd,bhkd->bhqk', q, k) / math.sqrt(HEAD_DIM)
        p = jax.nn.softmax(s, axis=-1)
        o = jnp.einsum('bhqk,bhkd->bhqd', p, v).transpose(0, 2, 1, 3).reshape(B, S, -1)
        return o @ wo

    scale = float(params["scale"][0, 0])
    a1 = ref_attn(x, *params["size_attn"])
    means = jax.nn.sigmoid(a1).mean(axis=1)
    sizes = np.asarray(jax.device_get(
        (means * scale * (OUT_MAX - OUT_MIN) + OUT_MIN).astype(jnp.int32).squeeze(-1)))
    L = int(sizes.max())
    a2 = ref_attn(x, *params["pool_attn"])
    w = np.asarray(jax.nn.sigmoid(a2)[..., 0])
    xh = np.asarray(x)
    pooled = np.zeros((B, L, HC), np.float32)
    mask = np.zeros((B, L), bool)
    for b in range(B):
        n = int(sizes[b])
        intervals = np.linspace(0, S, n + 1).astype(np.int64)
        vals = []
        for i in range(n):
            st, en = int(intervals[i]), int(intervals[i + 1])
            cw, cx = w[b, st:en], xh[b, st:en]
            if cw.sum() == 0:
                vals.append(np.zeros(HC, np.float32))
            else:
                vals.append((cx * cw[:, None]).sum(0) / (cw.sum() + 1e-8))
        pooled[b, L - n:] = np.stack(vals)
        mask[b, L - n:] = True
    h = jax.nn.gelu(jnp.asarray(pooled) @ params["w1"] + params["b1"][0], approximate=True)
    h = h @ params["w2"] + params["b2"][0]
    return np.asarray(h), mask, sizes


if __name__ == "__main__":
    key = jax.random.PRNGKey(0)
    ks = jax.random.split(key, 13)

    def nrm(k, shape):
        return 0.02 * jax.random.normal(k, shape, jnp.float32)

    params = {
        "size_attn": (nrm(ks[0], (HC, QD)), nrm(ks[1], (HC, KD)),
                      nrm(ks[2], (HC, KD)), nrm(ks[3], (QD, 1))),
        "pool_attn": (nrm(ks[4], (HC, QD)), nrm(ks[5], (HC, KD)),
                      nrm(ks[6], (HC, KD)), nrm(ks[7], (QD, 1))),
        "w1": nrm(ks[8], (HC, HT)),
        "b1": nrm(ks[9], (1, HT)),
        "w2": nrm(ks[10], (HT, HT)),
        "b2": nrm(ks[11], (1, HT)),
        "scale": jnp.full((1, 1), SCALE_PARAM, jnp.float32),
    }
    params.update(fuse_attention_weights(params["size_attn"], params["pool_attn"]))
    context_features = jax.random.normal(ks[12], (B, S, HC), jnp.float32)

    out, mask, sizes = connector_forward(context_features, params)
    jax.block_until_ready(out)
    jax.block_until_ready(mask)

    ref_out, ref_mask, ref_sizes = ref_forward(context_features, params)
    assert np.array_equal(np.asarray(sizes), np.asarray(ref_sizes)), "dynamic sizes mismatch"
    assert np.array_equal(np.asarray(mask), ref_mask), "attention mask mismatch"
    np.testing.assert_allclose(np.asarray(out), ref_out, rtol=1e-3, atol=1e-3)

    print("KERNEL_OK")
</pallas_src>

<mosaic_0001>
module attributes {stable_mosaic.version = 11 : i64} {
  func.func @_dual_attn_kernel(%arg0: i32, %arg1: memref<1x8x32xf32, #tpu.memory_space<vmem>>, %arg2: memref<32x64xf32, #tpu.memory_space<vmem>>, %arg3: memref<32x32xf32, #tpu.memory_space<vmem>>, %arg4: memref<32x32xf32, #tpu.memory_space<vmem>>, %arg5: memref<64x2xf32, #tpu.memory_space<vmem>>, %arg6: memref<1x1xf32, #tpu.memory_space<vmem>>, %arg7: memref<1x1x1xi32, #tpu.memory_space<vmem>>, %arg8: memref<1x8x1xf32, #tpu.memory_space<vmem>>) attributes {dimension_semantics = [#tpu.dimension_semantics<parallel>], iteration_bounds = array<i64: 2>, scalar_prefetch = 0 : i64, scratch_operands = 0 : i64, tpu.core_type = #tpu.core_type<tc>, window_params = [{transform_indices = @transform_0, window_bounds = array<i64: 1, 8, 32>}, {pipeline_mode = #tpu.pipeline_mode<synchronous>, transform_indices = @transform_1, window_bounds = array<i64: 32, 64>}, {pipeline_mode = #tpu.pipeline_mode<synchronous>, transform_indices = @transform_2, window_bounds = array<i64: 32, 32>}, {pipeline_mode = #tpu.pipeline_mode<synchronous>, transform_indices = @transform_3, window_bounds = array<i64: 32, 32>}, {pipeline_mode = #tpu.pipeline_mode<synchronous>, transform_indices = @transform_4, window_bounds = array<i64: 64, 2>}, {pipeline_mode = #tpu.pipeline_mode<synchronous>, transform_indices = @transform_5, window_bounds = array<i64: 1, 1>}, {transform_indices = @transform_6, window_bounds = array<i64: 1, 1, 1>}, {transform_indices = @transform_7, window_bounds = array<i64: 1, 8, 1>}]} {
    %c0 = arith.constant 0 : index
    %c0_0 = arith.constant 0 : index
    %c0_1 = arith.constant 0 : index
    %0 = vector.load %arg1[%c0, %c0_0, %c0_1] : memref<1x8x32xf32, #tpu.memory_space<vmem>>, vector<1x8x32xf32>
    %1 = vector.shape_cast %0 : vector<1x8x32xf32> to vector<8x32xf32>
    %c0_2 = arith.constant 0 : index
    %c0_3 = arith.constant 0 : index
    %2 = vector.load %arg2[%c0_2, %c0_3] : memref<32x64xf32, #tpu.memory_space<vmem>>, vector<32x64xf32>
    %cst = arith.constant dense<0.000000e+00> : vector<8x64xf32>
    %3 = tpu.matmul %1, %2, %cst {dimension_numbers = #tpu.dot_dimension_numbers<[1], [0], [0], [1], [0, 0, 1, 1], [], []>} : vector<8x32xf32>, vector<32x64xf32>, vector<8x64xf32> -> vector<8x64xf32>
    %c0_4 = arith.constant 0 : index
    %c0_5 = arith.constant 0 : index
    %4 = vector.load %arg3[%c0_4, %c0_5] : memref<32x32xf32, #tpu.memory_space<vmem>>, vector<32x32xf32>
    %cst_6 = arith.constant dense<0.000000e+00> : vector<8x32xf32>
    %5 = tpu.matmul %1, %4, %cst_6 {dimension_numbers = #tpu.dot_dimension_numbers<[1], [0], [0], [1], [0, 0, 1, 1], [], []>} : vector<8x32xf32>, vector<32x32xf32>, vector<8x32xf32> -> vector<8x32xf32>
    %c0_7 = arith.constant 0 : index
    %c0_8 = arith.constant 0 : index
    %6 = vector.load %arg4[%c0_7, %c0_8] : memref<32x32xf32, #tpu.memory_space<vmem>>, vector<32x32xf32>
    %cst_9 = arith.constant dense<0.000000e+00> : vector<8x32xf32>
    %7 = tpu.matmul %1, %6, %cst_9 {dimension_numbers = #tpu.dot_dimension_numbers<[1], [0], [0], [1], [0, 0, 1, 1], [], []>} : vector<8x32xf32>, vector<32x32xf32>, vector<8x32xf32> -> vector<8x32xf32>
    %8 = vector.extract_strided_slice %3 {offsets = [0, 0], sizes = [8, 8], strides = [1, 1]} : vector<8x64xf32> to vector<8x8xf32>
    %9 = vector.extract_strided_slice %5 {offsets = [0, 0], sizes = [8, 8], strides = [1, 1]} : vector<8x32xf32> to vector<8x8xf32>
    %10 = vector.extract_strided_slice %7 {offsets = [0, 0], sizes = [8, 8], strides = [1, 1]} : vector<8x32xf32> to vector<8x8xf32>
    %cst_10 = arith.constant dense<0.000000e+00> : vector<8x8xf32>
    %11 = tpu.matmul %8, %9, %cst_10 {dimension_numbers = #tpu.dot_dimension_numbers<[1], [1], [0], [0], [0, 0, 1, 0], [], []>} : vector<8x8xf32>, vector<8x8xf32>, vector<8x8xf32> -> vector<8x8xf32>
    %cst_11 = arith.constant 0.353553385 : f32
    %12 = vector.broadcast %cst_11 : f32 to vector<8x8xf32>
    %13 = arith.mulf %11, %12 : vector<8x8xf32>
    %cst_12 = arith.constant dense<0xFF800000> : vector<8xf32>
    %14 = vector.multi_reduction <maximumf>, %13, %cst_12 [1] : vector<8x8xf32> to vector<8xf32>
    %15 = vector.shape_cast %14 : vector<8xf32> to vector<8x1xf32>
    %16 = vector.broadcast %15 : vector<8x1xf32> to vector<8x8xf32>
    %17 = arith.subf %13, %16 : vector<8x8xf32>
    %18 = math.exp %17 : vector<8x8xf32>
    %cst_13 = arith.constant dense<0.000000e+00> : vector<8xf32>
    %19 = vector.multi_reduction <add>, %18, %cst_13 [1] : vector<8x8xf32> to vector<8xf32>
    %20 = vector.shape_cast %19 : vector<8xf32> to vector<8x1xf32>
    %21 = vector.broadcast %20 : vector<8x1xf32> to vector<8x8xf32>
    %22 = arith.divf %18, %21 : vector<8x8xf32>
    %cst_14 = arith.constant dense<0.000000e+00> : vector<8x8xf32>
    %23 = tpu.matmul %22, %10, %cst_14 {dimension_numbers = #tpu.dot_dimension_numbers<[1], [0], [0], [1], [0, 0, 1, 1], [], []>} : vector<8x8xf32>, vector<8x8xf32>, vector<8x8xf32> -> vector<8x8xf32>
    %24 = vector.extract_strided_slice %3 {offsets = [0, 8], sizes = [8, 8], strides = [1, 1]} : vector<8x64xf32> to vector<8x8xf32>
    %25 = vector.extract_strided_slice %5 {offsets = [0, 0], sizes = [8, 8], strides = [1, 1]} : vector<8x32xf32> to vector<8x8xf32>
    %26 = vector.extract_strided_slice %7 {offsets = [0, 0], sizes = [8, 8], strides = [1, 1]} : vector<8x32xf32> to vector<8x8xf32>
    %cst_15 = arith.constant dense<0.000000e+00> : vector<8x8xf32>
    %27 = tpu.matmul %24, %25, %cst_15 {dimension_numbers = #tpu.dot_dimension_numbers<[1], [1], [0], [0], [0, 0, 1, 0], [], []>} : vector<8x8xf32>, vector<8x8xf32>, vector<8x8xf32> -> vector<8x8xf32>
    %cst_16 = arith.constant 0.353553385 : f32
    %28 = vector.broadcast %cst_16 : f32 to vector<8x8xf32>
    %29 = arith.mulf %27, %28 : vector<8x8xf32>
    %cst_17 = arith.constant dense<0xFF800000> : vector<8xf32>
    %30 = vector.multi_reduction <maximumf>, %29, %cst_17 [1] : vector<8x8xf32> to vector<8xf32>
    %31 = vector.shape_cast %30 : vector<8xf32> to vector<8x1xf32>
    %32 = vector.broadcast %31 : vector<8x1xf32> to vector<8x8xf32>
    %33 = arith.subf %29, %32 : vector<8x8xf32>
    %34 = math.exp %33 : vector<8x8xf32>
    %cst_18 = arith.constant dense<0.000000e+00> : vector<8xf32>
    %35 = vector.multi_reduction <add>, %34, %cst_18 [1] : vector<8x8xf32> to vector<8xf32>
    %36 = vector.shape_cast %35 : vector<8xf32> to vector<8x1xf32>
    %37 = vector.broadcast %36 : vector<8x1xf32> to vector<8x8xf32>
    %38 = arith.divf %34, %37 : vector<8x8xf32>
    %cst_19 = arith.constant dense<0.000000e+00> : vector<8x8xf32>
    %39 = tpu.matmul %38, %26, %cst_19 {dimension_numbers = #tpu.dot_dimension_numbers<[1], [0], [0], [1], [0, 0, 1, 1], [], []>} : vector<8x8xf32>, vector<8x8xf32>, vector<8x8xf32> -> vector<8x8xf32>
    %40 = vector.extract_strided_slice %3 {offsets = [0, 16], sizes = [8, 8], strides = [1, 1]} : vector<8x64xf32> to vector<8x8xf32>
    %41 = vector.extract_strided_slice %5 {offsets = [0, 8], sizes = [8, 8], strides = [1, 1]} : vector<8x32xf32> to vector<8x8xf32>
    %42 = vector.extract_strided_slice %7 {offsets = [0, 8], sizes = [8, 8], strides = [1, 1]} : vector<8x32xf32> to vector<8x8xf32>
    %cst_20 = arith.constant dense<0.000000e+00> : vector<8x8xf32>
    %43 = tpu.matmul %40, %41, %cst_20 {dimension_numbers = #tpu.dot_dimension_numbers<[1], [1], [0], [0], [0, 0, 1, 0], [], []>} : vector<8x8xf32>, vector<8x8xf32>, vector<8x8xf32> -> vector<8x8xf32>
    %cst_21 = arith.constant 0.353553385 : f32
    %44 = vector.broadcast %cst_21 : f32 to vector<8x8xf32>
    %45 = arith.mulf %43, %44 : vector<8x8xf32>
    %cst_22 = arith.constant dense<0xFF800000> : vector<8xf32>
    %46 = vector.multi_reduction <maximumf>, %45, %cst_22 [1] : vector<8x8xf32> to vector<8xf32>
    %47 = vector.shape_cast %46 : vector<8xf32> to vector<8x1xf32>
    %48 = vector.broadcast %47 : vector<8x1xf32> to vector<8x8xf32>
    %49 = arith.subf %45, %48 : vector<8x8xf32>
    %50 = math.exp %49 : vector<8x8xf32>
    %cst_23 = arith.constant dense<0.000000e+00> : vector<8xf32>
    %51 = vector.multi_reduction <add>, %50, %cst_23 [1] : vector<8x8xf32> to vector<8xf32>
    %52 = vector.shape_cast %51 : vector<8xf32> to vector<8x1xf32>
    %53 = vector.broadcast %52 : vector<8x1xf32> to vector<8x8xf32>
    %54 = arith.divf %50, %53 : vector<8x8xf32>
    %cst_24 = arith.constant dense<0.000000e+00> : vector<8x8xf32>
    %55 = tpu.matmul %54, %42, %cst_24 {dimension_numbers = #tpu.dot_dimension_numbers<[1], [0], [0], [1], [0, 0, 1, 1], [], []>} : vector<8x8xf32>, vector<8x8xf32>, vector<8x8xf32> -> vector<8x8xf32>
    %56 = vector.extract_strided_slice %3 {offsets = [0, 24], sizes = [8, 8], strides = [1, 1]} : vector<8x64xf32> to vector<8x8xf32>
    %57 = vector.extract_strided_slice %5 {offsets = [0, 8], sizes = [8, 8], strides = [1, 1]} : vector<8x32xf32> to vector<8x8xf32>
    %58 = vector.extract_strided_slice %7 {offsets = [0, 8], sizes = [8, 8], strides = [1, 1]} : vector<8x32xf32> to vector<8x8xf32>
    %cst_25 = arith.constant dense<0.000000e+00> : vector<8x8xf32>
    %59 = tpu.matmul %56, %57, %cst_25 {dimension_numbers = #tpu.dot_dimension_numbers<[1], [1], [0], [0], [0, 0, 1, 0], [], []>} : vector<8x8xf32>, vector<8x8xf32>, vector<8x8xf32> -> vector<8x8xf32>
    %cst_26 = arith.constant 0.353553385 : f32
    %60 = vector.broadcast %cst_26 : f32 to vector<8x8xf32>
    %61 = arith.mulf %59, %60 : vector<8x8xf32>
    %cst_27 = arith.constant dense<0xFF800000> : vector<8xf32>
    %62 = vector.multi_reduction <maximumf>, %61, %cst_27 [1] : vector<8x8xf32> to vector<8xf32>
    %63 = vector.shape_cast %62 : vector<8xf32> to vector<8x1xf32>
    %64 = vector.broadcast %63 : vector<8x1xf32> to vector<8x8xf32>
    %65 = arith.subf %61, %64 : vector<8x8xf32>
    %66 = math.exp %65 : vector<8x8xf32>
    %cst_28 = arith.constant dense<0.000000e+00> : vector<8xf32>
    %67 = vector.multi_reduction <add>, %66, %cst_28 [1] : vector<8x8xf32> to vector<8xf32>
    %68 = vector.shape_cast %67 : vector<8xf32> to vector<8x1xf32>
    %69 = vector.broadcast %68 : vector<8x1xf32> to vector<8x8xf32>
    %70 = arith.divf %66, %69 : vector<8x8xf32>
    %cst_29 = arith.constant dense<0.000000e+00> : vector<8x8xf32>
    %71 = tpu.matmul %70, %58, %cst_29 {dimension_numbers = #tpu.dot_dimension_numbers<[1], [0], [0], [1], [0, 0, 1, 1], [], []>} : vector<8x8xf32>, vector<8x8xf32>, vector<8x8xf32> -> vector<8x8xf32>
    %72 = vector.extract_strided_slice %3 {offsets = [0, 32], sizes = [8, 8], strides = [1, 1]} : vector<8x64xf32> to vector<8x8xf32>
    %73 = vector.extract_strided_slice %5 {offsets = [0, 16], sizes = [8, 8], strides = [1, 1]} : vector<8x32xf32> to vector<8x8xf32>
    %74 = vector.extract_strided_slice %7 {offsets = [0, 16], sizes = [8, 8], strides = [1, 1]} : vector<8x32xf32> to vector<8x8xf32>
    %cst_30 = arith.constant dense<0.000000e+00> : vector<8x8xf32>
    %75 = tpu.matmul %72, %73, %cst_30 {dimension_numbers = #tpu.dot_dimension_numbers<[1], [1], [0], [0], [0, 0, 1, 0], [], []>} : vector<8x8xf32>, vector<8x8xf32>, vector<8x8xf32> -> vector<8x8xf32>
    %cst_31 = arith.constant 0.353553385 : f32
    %76 = vector.broadcast %cst_31 : f32 to vector<8x8xf32>
    %77 = arith.mulf %75, %76 : vector<8x8xf32>
    %cst_32 = arith.constant dense<0xFF800000> : vector<8xf32>
    %78 = vector.multi_reduction <maximumf>, %77, %cst_32 [1] : vector<8x8xf32> to vector<8xf32>
    %79 = vector.shape_cast %78 : vector<8xf32> to vector<8x1xf32>
    %80 = vector.broadcast %79 : vector<8x1xf32> to vector<8x8xf32>
    %81 = arith.subf %77, %80 : vector<8x8xf32>
    %82 = math.exp %81 : vector<8x8xf32>
    %cst_33 = arith.constant dense<0.000000e+00> : vector<8xf32>
    %83 = vector.multi_reduction <add>, %82, %cst_33 [1] : vector<8x8xf32> to vector<8xf32>
    %84 = vector.shape_cast %83 : vector<8xf32> to vector<8x1xf32>
    %85 = vector.broadcast %84 : vector<8x1xf32> to vector<8x8xf32>
    %86 = arith.divf %82, %85 : vector<8x8xf32>
    %cst_34 = arith.constant dense<0.000000e+00> : vector<8x8xf32>
    %87 = tpu.matmul %86, %74, %cst_34 {dimension_numbers = #tpu.dot_dimension_numbers<[1], [0], [0], [1], [0, 0, 1, 1], [], []>} : vector<8x8xf32>, vector<8x8xf32>, vector<8x8xf32> -> vector<8x8xf32>
    %88 = vector.extract_strided_slice %3 {offsets = [0, 40], sizes = [8, 8], strides = [1, 1]} : vector<8x64xf32> to vector<8x8xf32>
    %89 = vector.extract_strided_slice %5 {offsets = [0, 16], sizes = [8, 8], strides = [1, 1]} : vector<8x32xf32> to vector<8x8xf32>
    %90 = vector.extract_strided_slice %7 {offsets = [0, 16], sizes = [8, 8], strides = [1, 1]} : vector<8x32xf32> to vector<8x8xf32>
    %cst_35 = arith.constant dense<0.000000e+00> : vector<8x8xf32>
    %91 = tpu.matmul %88, %89, %cst_35 {dimension_numbers = #tpu.dot_dimension_numbers<[1], [1], [0], [0], [0, 0, 1, 0], [], []>} : vector<8x8xf32>, vector<8x8xf32>, vector<8x8xf32> -> vector<8x8xf32>
    %cst_36 = arith.constant 0.353553385 : f32
    %92 = vector.broadcast %cst_36 : f32 to vector<8x8xf32>
    %93 = arith.mulf %91, %92 : vector<8x8xf32>
    %cst_37 = arith.constant dense<0xFF800000> : vector<8xf32>
    %94 = vector.multi_reduction <maximumf>, %93, %cst_37 [1] : vector<8x8xf32> to vector<8xf32>
    %95 = vector.shape_cast %94 : vector<8xf32> to vector<8x1xf32>
    %96 = vector.broadcast %95 : vector<8x1xf32> to vector<8x8xf32>
    %97 = arith.subf %93, %96 : vector<8x8xf32>
    %98 = math.exp %97 : vector<8x8xf32>
    %cst_38 = arith.constant dense<0.000000e+00> : vector<8xf32>
    %99 = vector.multi_reduction <add>, %98, %cst_38 [1] : vector<8x8xf32> to vector<8xf32>
    %100 = vector.shape_cast %99 : vector<8xf32> to vector<8x1xf32>
    %101 = vector.broadcast %100 : vector<8x1xf32> to vector<8x8xf32>
    %102 = arith.divf %98, %101 : vector<8x8xf32>
    %cst_39 = arith.constant dense<0.000000e+00> : vector<8x8xf32>
    %103 = tpu.matmul %102, %90, %cst_39 {dimension_numbers = #tpu.dot_dimension_numbers<[1], [0], [0], [1], [0, 0, 1, 1], [], []>} : vector<8x8xf32>, vector<8x8xf32>, vector<8x8xf32> -> vector<8x8xf32>
    %104 = vector.extract_strided_slice %3 {offsets = [0, 48], sizes = [8, 8], strides = [1, 1]} : vector<8x64xf32> to vector<8x8xf32>
    %105 = vector.extract_strided_slice %5 {offsets = [0, 24], sizes = [8, 8], strides = [1, 1]} : vector<8x32xf32> to vector<8x8xf32>
    %106 = vector.extract_strided_slice %7 {offsets = [0, 24], sizes = [8, 8], strides = [1, 1]} : vector<8x32xf32> to vector<8x8xf32>
    %cst_40 = arith.constant dense<0.000000e+00> : vector<8x8xf32>
    %107 = tpu.matmul %104, %105, %cst_40 {dimension_numbers = #tpu.dot_dimension_numbers<[1], [1], [0], [0], [0, 0, 1, 0], [], []>} : vector<8x8xf32>, vector<8x8xf32>, vector<8x8xf32> -> vector<8x8xf32>
    %cst_41 = arith.constant 0.353553385 : f32
    %108 = vector.broadcast %cst_41 : f32 to vector<8x8xf32>
    %109 = arith.mulf %107, %108 : vector<8x8xf32>
    %cst_42 = arith.constant dense<0xFF800000> : vector<8xf32>
    %110 = vector.multi_reduction <maximumf>, %109, %cst_42 [1] : vector<8x8xf32> to vector<8xf32>
    %111 = vector.shape_cast %110 : vector<8xf32> to vector<8x1xf32>
    %112 = vector.broadcast %111 : vector<8x1xf32> to vector<8x8xf32>
    %113 = arith.subf %109, %112 : vector<8x8xf32>
    %114 = math.exp %113 : vector<8x8xf32>
    %cst_43 = arith.constant dense<0.000000e+00> : vector<8xf32>
    %115 = vector.multi_reduction <add>, %114, %cst_43 [1] : vector<8x8xf32> to vector<8xf32>
    %116 = vector.shape_cast %115 : vector<8xf32> to vector<8x1xf32>
    %117 = vector.broadcast %116 : vector<8x1xf32> to vector<8x8xf32>
    %118 = arith.divf %114, %117 : vector<8x8xf32>
    %cst_44 = arith.constant dense<0.000000e+00> : vector<8x8xf32>
    %119 = tpu.matmul %118, %106, %cst_44 {dimension_numbers = #tpu.dot_dimension_numbers<[1], [0], [0], [1], [0, 0, 1, 1], [], []>} : vector<8x8xf32>, vector<8x8xf32>, vector<8x8xf32> -> vector<8x8xf32>
    %120 = vector.extract_strided_slice %3 {offsets = [0, 56], sizes = [8, 8], strides = [1, 1]} : vector<8x64xf32> to vector<8x8xf32>
    %121 = vector.extract_strided_slice %5 {offsets = [0, 24], sizes = [8, 8], strides = [1, 1]} : vector<8x32xf32> to vector<8x8xf32>
    %122 = vector.extract_strided_slice %7 {offsets = [0, 24], sizes = [8, 8], strides = [1, 1]} : vector<8x32xf32> to vector<8x8xf32>
    %cst_45 = arith.constant dense<0.000000e+00> : vector<8x8xf32>
    %123 = tpu.matmul %120, %121, %cst_45 {dimension_numbers = #tpu.dot_dimension_numbers<[1], [1], [0], [0], [0, 0, 1, 0], [], []>} : vector<8x8xf32>, vector<8x8xf32>, vector<8x8xf32> -> vector<8x8xf32>
    %cst_46 = arith.constant 0.353553385 : f32
    %124 = vector.broadcast %cst_46 : f32 to vector<8x8xf32>
    %125 = arith.mulf %123, %124 : vector<8x8xf32>
    %cst_47 = arith.constant dense<0xFF800000> : vector<8xf32>
    %126 = vector.multi_reduction <maximumf>, %125, %cst_47 [1] : vector<8x8xf32> to vector<8xf32>
    %127 = vector.shape_cast %126 : vector<8xf32> to vector<8x1xf32>
    %128 = vector.broadcast %127 : vector<8x1xf32> to vector<8x8xf32>
    %129 = arith.subf %125, %128 : vector<8x8xf32>
    %130 = math.exp %129 : vector<8x8xf32>
    %cst_48 = arith.constant dense<0.000000e+00> : vector<8xf32>
    %131 = vector.multi_reduction <add>, %130, %cst_48 [1] : vector<8x8xf32> to vector<8xf32>
    %132 = vector.shape_cast %131 : vector<8xf32> to vector<8x1xf32>
    %133 = vector.broadcast %132 : vector<8x1xf32> to vector<8x8xf32>
    %134 = arith.divf %130, %133 : vector<8x8xf32>
    %cst_49 = arith.constant dense<0.000000e+00> : vector<8x8xf32>
    %135 = tpu.matmul %134, %122, %cst_49 {dimension_numbers = #tpu.dot_dimension_numbers<[1], [0], [0], [1], [0, 0, 1, 1], [], []>} : vector<8x8xf32>, vector<8x8xf32>, vector<8x8xf32> -> vector<8x8xf32>
    %136 = tpu.concatenate %23, %39, %55, %71, %87, %103, %119, %135 in 1 : vector<8x8xf32>, vector<8x8xf32>, vector<8x8xf32>, vector<8x8xf32>, vector<8x8xf32>, vector<8x8xf32>, vector<8x8xf32>, vector<8x8xf32> -> vector<8x64xf32>
    %c0_50 = arith.constant 0 : index
    %c0_51 = arith.constant 0 : index
    %137 = vector.load %arg5[%c0_50, %c0_51] : memref<64x2xf32, #tpu.memory_space<vmem>>, vector<64x2xf32>
    %cst_52 = arith.constant dense<0.000000e+00> : vector<8x2xf32>
    %138 = tpu.matmul %136, %137, %cst_52 {dimension_numbers = #tpu.dot_dimension_numbers<[1], [0], [0], [1], [0, 0, 1, 1], [], []>} : vector<8x64xf32>, vector<64x2xf32>, vector<8x2xf32> -> vector<8x2xf32>
    %139 = arith.negf %138 : vector<8x2xf32>
    %140 = math.exp %139 : vector<8x2xf32>
    %cst_53 = arith.constant 1.000000e+00 : f32
    %141 = vector.broadcast %cst_53 : f32 to vector<8x2xf32>
    %142 = arith.addf %141, %140 : vector<8x2xf32>
    %143 = arith.divf %141, %142 : vector<8x2xf32>
    %144 = vector.extract_strided_slice %143 {offsets = [0, 0], sizes = [8, 1], strides = [1, 1]} : vector<8x2xf32> to vector<8x1xf32>
    %cst_54 = arith.constant dense<0.000000e+00> : vector<1xf32>
    %145 = vector.multi_reduction <add>, %144, %cst_54 [0] : vector<8x1xf32> to vector<1xf32>
    %146 = vector.shape_cast %145 : vector<1xf32> to vector<1x1xf32>
    %cst_55 = arith.constant 8.000000e+00 : f32
    %147 = vector.broadcast %cst_55 : f32 to vector<1x1xf32>
    %148 = arith.divf %146, %147 : vector<1x1xf32>
    %c0_56 = arith.constant 0 : index
    %c0_57 = arith.constant 0 : index
    %149 = vector.load %arg6[%c0_56, %c0_57] : memref<1x1xf32, #tpu.memory_space<vmem>>, vector<1x1xf32>
    %150 = arith.mulf %148, %149 : vector<1x1xf32>
    %cst_58 = arith.constant 5.100000e+02 : f32
    %151 = vector.broadcast %cst_58 : f32 to vector<1x1xf32>
    %152 = arith.mulf %150, %151 : vector<1x1xf32>
    %cst_59 = arith.constant 2.000000e+00 : f32
    %153 = vector.broadcast %cst_59 : f32 to vector<1x1xf32>
    %154 = arith.addf %152, %153 : vector<1x1xf32>
    %155 = arith.fptosi %154 : vector<1x1xf32> to vector<1x1xi32>
    %c0_60 = arith.constant 0 : index
    %c0_61 = arith.constant 0 : index
    %c0_62 = arith.constant 0 : index
    %156 = vector.load %arg7[%c0_60, %c0_61, %c0_62] : memref<1x1x1xi32, #tpu.memory_space<vmem>>, vector<1x1x1xi32>
    %157 = vector.shape_cast %156 : vector<1x1x1xi32> to vector<1x1xi32>
    %158 = vector.shape_cast %155 : vector<1x1xi32> to vector<1x1x1xi32>
    tpu.vector_store %arg7[%c0_60, %c0_61, %c0_62], %158 {strides = array<i32>} : memref<1x1x1xi32, #tpu.memory_space<vmem>>, vector<1x1x1xi32>,
    %159 = vector.extract_strided_slice %143 {offsets = [0, 1], sizes = [8, 1], strides = [1, 1]} : vector<8x2xf32> to vector<8x1xf32>
    %c0_63 = arith.constant 0 : index
    %c0_64 = arith.constant 0 : index
    %c0_65 = arith.constant 0 : index
    %160 = vector.load %arg8[%c0_63, %c0_64, %c0_65] : memref<1x8x1xf32, #tpu.memory_space<vmem>>, vector<1x8x1xf32>
    %161 = vector.shape_cast %160 : vector<1x8x1xf32> to vector<8x1xf32>
    %162 = vector.shape_cast %159 : vector<8x1xf32> to vector<1x8x1xf32>
    tpu.vector_store %arg8[%c0_63, %c0_64, %c0_65], %162 {strides = array<i32>} : memref<1x8x1xf32, #tpu.memory_space<vmem>>, vector<1x8x1xf32>,
    return
  }
  func.func @transform_0(%arg0: i32) -> (i32, i32, i32) {
    %c0_i32 = arith.constant 0 : i32
    %c0_i32_0 = arith.constant 0 : i32
    %c0_i32_1 = arith.constant 0 : i32
    return %arg0, %c0_i32, %c0_i32_0 : i32, i32, i32
  }
  func.func @transform_1(%arg0: i32) -> (i32, i32) {
    %c0_i32 = arith.constant 0 : i32
    %c0_i32_0 = arith.constant 0 : i32
    %c0_i32_1 = arith.constant 0 : i32
    return %c0_i32, %c0_i32_0 : i32, i32
  }
  func.func @transform_2(%arg0: i32) -> (i32, i32) {
    %c0_i32 = arith.constant 0 : i32
    %c0_i32_0 = arith.constant 0 : i32
    %c0_i32_1 = arith.constant 0 : i32
    return %c0_i32, %c0_i32_0 : i32, i32
  }
  func.func @transform_3(%arg0: i32) -> (i32, i32) {
    %c0_i32 = arith.constant 0 : i32
    %c0_i32_0 = arith.constant 0 : i32
    %c0_i32_1 = arith.constant 0 : i32
    return %c0_i32, %c0_i32_0 : i32, i32
  }
  func.func @transform_4(%arg0: i32) -> (i32, i32) {
    %c0_i32 = arith.constant 0 : i32
    %c0_i32_0 = arith.constant 0 : i32
    %c0_i32_1 = arith.constant 0 : i32
    return %c0_i32, %c0_i32_0 : i32, i32
  }
  func.func @transform_5(%arg0: i32) -> (i32, i32) {
    %c0_i32 = arith.constant 0 : i32
    %c0_i32_0 = arith.constant 0 : i32
    %c0_i32_1 = arith.constant 0 : i32
    return %c0_i32, %c0_i32_0 : i32, i32
  }
  func.func @transform_6(%arg0: i32) -> (i32, i32, i32) {
    %c0_i32 = arith.constant 0 : i32
    %c0_i32_0 = arith.constant 0 : i32
    %c0_i32_1 = arith.constant 0 : i32
    return %arg0, %c0_i32, %c0_i32_0 : i32, i32, i32
  }
  func.func @transform_7(%arg0: i32) -> (i32, i32, i32) {
    %c0_i32 = arith.constant 0 : i32
    %c0_i32_0 = arith.constant 0 : i32
    %c0_i32_1 = arith.constant 0 : i32
    return %arg0, %c0_i32, %c0_i32_0 : i32, i32, i32
  }
}

</mosaic_0001>

<llo_original>
// kernel: tpu_custom_call.1
$region0: #{tpu_custom_call.1}
  #allocation0 [shape = 'u32[]', space=smem, size = 0x4, offset = 0x4, fixed_abs, tag = 'smem constant byte address 0x4 - core index']
  #allocation1 [shape = 'u32[144,128]{1,0:T(1,128)}', space=vmem, size = 0x12000, scoped, tag = 'internal scratch']
  #allocation2 [shape = 'f32[1,1]{1,0:T(1,128)S(1)}', space=vmem, size = 0x200, scoped, tag = 'scoped memory for tpu_custom_call.1']
  %s0 = inlined_call_operand.hbm [shape: f32[2,8,32], index: 0, kind: input, shape index: {}]
  %s1 = inlined_call_operand.vmem [shape: f32[32,64], index: 1, kind: input, shape index: {}]
  %s2 = inlined_call_operand.vmem [shape: f32[32,32], index: 2, kind: input, shape index: {}]
  %s3 = inlined_call_operand.hbm [shape: f32[32,32], index: 3, kind: input, shape index: {}]
  %s4 = inlined_call_operand.vmem [shape: f32[64,2], index: 4, kind: input, shape index: {}]
  %s5 = inlined_call_operand.<no memory space> [shape: f32[1,1], index: 5, kind: input, shape index: {}]
  %s6 = inlined_call_operand.vmem [shape: s32[2,1,1], index: 6, kind: output, shape index: {0}]
  %s7 = inlined_call_operand.vmem [shape: f32[2,8,1], index: 7, kind: output, shape index: {1}]
  %8 = xla_tuple %s6, %s7
  %s9 = sld [smem:[#allocation0]]
  $region73: #{tpu_custom_call.1} parent=0
    _
  %s11 = ssub.s32 1, %s9
  %s12 = scalar_select 0, %s11, %s9
  %v13 = vstv %s5
  %14 = vst [vmem:[#allocation2] sm:$0x1] %v13
  $region1: #{tpu_custom_call.1} parent=0
    #allocation3 [shape = 'u8[8192]{0}', space=vmem, size = 0x2000, scoped, tag = 'input window, operand 0']
    #allocation4 [shape = 's32[2]{0}', space=sflag, size = 0x8, scoped, tag = 'scoped memory for tpu_custom_call.1']
    #allocation5 [shape = 'u8[16384]{0}', space=vmem, size = 0x4000, scoped, tag = 'input window, operand 3, single buffered']
    #allocation6 [shape = 's32[1]{0}', space=sflag, size = 0x4, scoped, tag = 'scoped memory for tpu_custom_call.1']
    %15 = vsyncpa [#allocation4], 0
    %s16 = scalar_lea.sflag [#allocation4], 1
    %17 = vsyncpa %s16, 0
    %18 = vsyncpa [#allocation6], 0
    loop: start=0, step=1, limit=4
    $region2: #{tpu_custom_call.1} parent=1 // loop_pre_header
      _
    $region3: #{tpu_custom_call.1} parent=1 // loop_header
      %s20 = sphi 0, %s24
      %p21 = scmp.ge.s32.totalorder %s20, 4
      %s30 = sphi 0, %s32
      %s33 = sphi 0, %s30
      %s34 = sphi 0, %s33
      %s50 = sphi 0, %s34
      %s54 = sphi 0, %s54
      %s56 = sphi 0, %s54
      %s57 = sphi 0, %s56
      %s71 = sphi 0, %s57
      %s75 = sphi 0, %s75
      %s77 = sphi 0, %s75
      %s78 = sphi 0, %s77
      %s92 = sphi 0, %s78
      %s96 = sphi 0, %s96
      %s98 = sphi 0, %s96
      %s99 = sphi 0, %s98
      %s113 = sphi 0, %s99
      %s117 = sphi 0, %s117
      %s119 = sphi 0, %s117
      %s120 = sphi 0, %s119
      %s134 = sphi 0, %s120
      %s138 = sphi 0, %s138
      %s140 = sphi 0, %s138
      %s141 = sphi 0, %s140
      %s155 = sphi 0, %s141
      %s161 = sphi 0, %s163
      %s164 = sphi 0, %s161
      %s165 = sphi 0, %s164
      %s181 = sphi 0, %s165
      %s187 = sphi 0, %s189
      %s190 = sphi 0, %s187
      %s191 = sphi 0, %s190
      %s207 = sphi 0, %s191
    $region4: #{tpu_custom_call.1} parent=1 // loop_header_branch
      %23 = sbr.rel (%p21) target = $region8
    $region5: #{tpu_custom_call.1} parent=1 // loop_body
      %s25 = ssub.s32 %s20, 1
      %s26 = ssub.s32 %s20, 2
      %s27 = sadd.s32 %s20, 1
      %s28 = ssub.s32 %s20, %s27
      %p29 = scmp.eq.s32.totalorder %s28, 0
      %s31 = sadd.s32 %s30, 1
      %s32 = scalar_select %p29, %s30, %s31
      %p35 = pneg %p29
      %p36 = scmp.eq.s32.totalorder %s20, 1
      %p37 = por %p35, %p36
      %p38 = scmp.ne.s32.totalorder %s30, %s33
      %p39 = scmp.eq.s32.totalorder %s20, 0
      %p40 = por %p38, %p39
      %p41 = scmp.ne.s32.totalorder %s30, %s33
      %p42 = scmp.eq.s32.totalorder %s25, 1
      %p43 = por %p41, %p42
      %p44 = scmp.ne.s32.totalorder %s33, %s34
      %p45 = scmp.eq.s32.totalorder %s25, 0
      %p46 = por %p44, %p45
      %p47 = scmp.ne.s32.totalorder %s33, %s34
      %p48 = scmp.eq.s32.totalorder %s26, 1
      %p49 = por %p47, %p48
      %p51 = scmp.ne.s32.totalorder %s34, %s50
      %p52 = scmp.eq.s32.totalorder %s26, 0
      %p53 = por %p51, %p52
      %s55 = sadd.s32 %s54, 1
      %p58 = scmp.eq.s32.totalorder %s20, 1
      %p59 = scmp.ne.s32.totalorder %s54, %s56
      %p60 = scmp.eq.s32.totalorder %s20, 0
      %p61 = por %p59, %p60
      %p62 = scmp.ne.s32.totalorder %s54, %s56
      %p63 = scmp.eq.s32.totalorder %s25, 1
      %p64 = por %p62, %p63
      %p65 = scmp.ne.s32.totalorder %s56, %s57
      %p66 = scmp.eq.s32.totalorder %s25, 0
      %p67 = por %p65, %p66
      %p68 = scmp.ne.s32.totalorder %s56, %s57
      %p69 = scmp.eq.s32.totalorder %s26, 1
      %p70 = por %p68, %p69
      %p72 = scmp.ne.s32.totalorder %s57, %s71
      %p73 = scmp.eq.s32.totalorder %s26, 0
      %p74 = por %p72, %p73
      %s76 = sadd.s32 %s75, 1
      %p79 = scmp.eq.s32.totalorder %s20, 1
      %p80 = scmp.ne.s32.totalorder %s75, %s77
      %p81 = scmp.eq.s32.totalorder %s20, 0
      %p82 = por %p80, %p81
      %p83 = scmp.ne.s32.totalorder %s75, %s77
      %p84 = scmp.eq.s32.totalorder %s25, 1
      %p85 = por %p83, %p84
      %p86 = scmp.ne.s32.totalorder %s77, %s78
      %p87 = scmp.eq.s32.totalorder %s25, 0
      %p88 = por %p86, %p87
      %p89 = scmp.ne.s32.totalorder %s77, %s78
      %p90 = scmp.eq.s32.totalorder %s26, 1
      %p91 = por %p89, %p90
      %p93 = scmp.ne.s32.totalorder %s78, %s92
      %p94 = scmp.eq.s32.totalorder %s26, 0
      %p95 = por %p93, %p94
      %s97 = sadd.s32 %s96, 1
      %p100 = scmp.eq.s32.totalorder %s20, 1
      %p101 = scmp.ne.s32.totalorder %s96, %s98
      %p102 = scmp.eq.s32.totalorder %s20, 0
      %p103 = por %p101, %p102
      %p104 = scmp.ne.s32.totalorder %s96, %s98
      %p105 = scmp.eq.s32.totalorder %s25, 1
      %p106 = por %p104, %p105
      %p107 = scmp.ne.s32.totalorder %s98, %s99
      %p108 = scmp.eq.s32.totalorder %s25, 0
      %p109 = por %p107, %p108
      %p110 = scmp.ne.s32.totalorder %s98, %s99
      %p111 = scmp.eq.s32.totalorder %s26, 1
      %p112 = por %p110, %p111
      %p114 = scmp.ne.s32.totalorder %s99, %s113
      %p115 = scmp.eq.s32.totalorder %s26, 0
      %p116 = por %p114, %p115
      %s118 = sadd.s32 %s117, 1
      %p121 = scmp.eq.s32.totalorder %s20, 1
      %p122 = scmp.ne.s32.totalorder %s117, %s119
      %p123 = scmp.eq.s32.totalorder %s20, 0
      %p124 = por %p122, %p123
      %p125 = scmp.ne.s32.totalorder %s117, %s119
      %p126 = scmp.eq.s32.totalorder %s25, 1
      %p127 = por %p125, %p126
      %p128 = scmp.ne.s32.totalorder %s119, %s120
      %p129 = scmp.eq.s32.totalorder %s25, 0
      %p130 = por %p128, %p129
      %p131 = scmp.ne.s32.totalorder %s119, %s120
      %p132 = scmp.eq.s32.totalorder %s26, 1
      %p133 = por %p131, %p132
      %p135 = scmp.ne.s32.totalorder %s120, %s134
      %p136 = scmp.eq.s32.totalorder %s26, 0
      %p137 = por %p135, %p136
      %s139 = sadd.s32 %s138, 1
      %p142 = scmp.eq.s32.totalorder %s20, 1
      %p143 = scmp.ne.s32.totalorder %s138, %s140
      %p144 = scmp.eq.s32.totalorder %s20, 0
      %p145 = por %p143, %p144
      %p146 = scmp.ne.s32.totalorder %s138, %s140
      %p147 = scmp.eq.s32.totalorder %s25, 1
      %p148 = por %p146, %p147
      %p149 = scmp.ne.s32.totalorder %s140, %s141
      %p150 = scmp.eq.s32.totalorder %s25, 0
      %p151 = por %p149, %p150
      %p152 = scmp.ne.s32.totalorder %s140, %s141
      %p153 = scmp.eq.s32.totalorder %s26, 1
      %p154 = por %p152, %p153
      %p156 = scmp.ne.s32.totalorder %s141, %s155
      %p157 = scmp.eq.s32.totalorder %s26, 0
      %p158 = por %p156, %p157
      %s159 = ssub.s32 %s20, %s27
      %p160 = scmp.eq.s32.totalorder %s159, 0
      %s162 = sadd.s32 %s161, 1
      %s163 = scalar_select %p160, %s161, %s162
      %p166 = pneg %p160
      %p167 = scmp.eq.s32.totalorder %s20, 1
      %p168 = por %p166, %p167
      %p169 = scmp.ne.s32.totalorder %s161, %s164
      %p170 = scmp.eq.s32.totalorder %s20, 0
      %p171 = por %p169, %p170
      %p172 = scmp.ne.s32.totalorder %s161, %s164
      %p173 = scmp.eq.s32.totalorder %s25, 1
      %p174 = por %p172, %p173
      %p175 = scmp.ne.s32.totalorder %s164, %s165
      %p176 = scmp.eq.s32.totalorder %s25, 0
      %p177 = por %p175, %p176
      %p178 = scmp.ne.s32.totalorder %s164, %s165
      %p179 = scmp.eq.s32.totalorder %s26, 1
      %p180 = por %p178, %p179
      %p182 = scmp.ne.s32.totalorder %s165, %s181
      %p183 = scmp.eq.s32.totalorder %s26, 0
      %p184 = por %p182, %p183
      %s185 = ssub.s32 %s20, %s27
      %p186 = scmp.eq.s32.totalorder %s185, 0
      %s188 = sadd.s32 %s187, 1
      %s189 = scalar_select %p186, %s187, %s188
      %p192 = pneg %p186
      %p193 = scmp.eq.s32.totalorder %s20, 1
      %p194 = por %p192, %p193
      %p195 = scmp.ne.s32.totalorder %s187, %s190
      %p196 = scmp.eq.s32.totalorder %s20, 0
      %p197 = por %p195, %p196
      %p198 = scmp.ne.s32.totalorder %s187, %s190
      %p199 = scmp.eq.s32.totalorder %s25, 1
      %p200 = por %p198, %p199
      %p201 = scmp.ne.s32.totalorder %s190, %s191
      %p202 = scmp.eq.s32.totalorder %s25, 0
      %p203 = por %p201, %p202
      %p204 = scmp.ne.s32.totalorder %s190, %s191
      %p205 = scmp.eq.s32.totalorder %s26, 1
      %p206 = por %p204, %p205
      %p208 = scmp.ne.s32.totalorder %s191, %s207
      %p209 = scmp.eq.s32.totalorder %s26, 0
      %p210 = por %p208, %p209
      %p211 = scmp.le.s32.totalorder 1, %s20
      %p212 = scmp.lt.s32.totalorder %s20, 3
      %p213 = pnand %p211, %p212
      %p214 = pneg %p213
      // Predicated region
      $region9: #{tpu_custom_call.1} parent=5 // pred_check
        _
      $region10: #{tpu_custom_call.1} parent=5 // pred_check_branch
        %216 = sbr.rel (%p213) target = $region12
      $region11: #{tpu_custom_call.1} parent=5 // pred_region
        %s217 = ssub.s32 %s20, 1
        // Predicated region
        $region13: #{tpu_custom_call.1} parent=11 // pred_check
          %p218 = pneg %p67
        $region14: #{tpu_custom_call.1} parent=11 // pred_check_branch
          %220 = sbr.rel (%p218) target = $region16
        $region15: #{tpu_custom_call.1} parent=11 // pred_region
          _
        $region16: #{tpu_custom_call.1} parent=11 // pred_fallthru
          _
        // Predicated region
        $region17: #{tpu_custom_call.1} parent=11 // pred_check
          %p221 = pneg %p88
        $region18: #{tpu_custom_call.1} parent=11 // pred_check_branch
          %223 = sbr.rel (%p221) target = $region20
        $region19: #{tpu_custom_call.1} parent=11 // pred_region
          _
        $region20: #{tpu_custom_call.1} parent=11 // pred_fallthru
          _
        // Predicated region
        $region21: #{tpu_custom_call.1} parent=11 // pred_check
          %p224 = pneg %p109
        $region22: #{tpu_custom_call.1} parent=11 // pred_check_branch
          %226 = sbr.rel (%p224) target = $region24
        $region23: #{tpu_custom_call.1} parent=11 // pred_region
          %s228 = ssub.s32 512, 512
          %229 = vsyncadd [#allocation6], %s228
          %s230 = sshll.u32 [#allocation5], 4
          %s231 = int_to_ptr.vmem [resolvable:$true] %s230
          %236 = dma.hbm_to_vmem [thread:$0]  %s3, 512, %s231, [#allocation6], 128, 128, 8
        $region24: #{tpu_custom_call.1} parent=11 // pred_fallthru
          _
        // Predicated region
        $region25: #{tpu_custom_call.1} parent=11 // pred_check
          %p237 = pneg %p130
        $region26: #{tpu_custom_call.1} parent=11 // pred_check_branch
          %239 = sbr.rel (%p237) target = $region28
        $region27: #{tpu_custom_call.1} parent=11 // pred_region
          _
        $region28: #{tpu_custom_call.1} parent=11 // pred_fallthru
          _
        // Predicated region
        $region29: #{tpu_custom_call.1} parent=11 // pred_check
          %p240 = pneg %p151
        $region30: #{tpu_custom_call.1} parent=11 // pred_check_branch
          %242 = sbr.rel (%p240) target = $region32
        $region31: #{tpu_custom_call.1} parent=11 // pred_region
          _
        $region32: #{tpu_custom_call.1} parent=11 // pred_fallthru
          _
      $region12: #{tpu_custom_call.1} parent=5 // pred_fallthru
        _
      %p243 = scmp.lt.s32.totalorder %s20, 2
      // Predicated region
      $region33: #{tpu_custom_call.1} parent=5 // pred_check
        %p244 = pneg %p243
      $region34: #{tpu_custom_call.1} parent=5 // pred_check_branch
        %246 = sbr.rel (%p244) target = $region36
      $region35: #{tpu_custom_call.1} parent=5 // pred_region
        // Predicated region
        $region37: #{tpu_custom_call.1} parent=35 // pred_check
          %p247 = pneg %p40
        $region38: #{tpu_custom_call.1} parent=35 // pred_check_branch
          %249 = sbr.rel (%p247) target = $region40
        $region39: #{tpu_custom_call.1} parent=35 // pred_region
          %s250 = sand.u32 %s30, 1
          %s251 = scalar_lea.sflag [#allocation4], %s250
          %s252 = sand.u32 %s30, 1
          %s253 = smul.addr %s252, 8
          %s254 = scalar_lea.vmem [#allocation3], %s253
          %s256 = ssub.s32 128, 128
          %257 = vsyncadd %s251, %s256
          %s258 = smul.addr %s20, 128
          %s259 = scalar_lea.hbm %s0, %s258
          %s261 = sshll.u32 %s254, 4
          %s262 = int_to_ptr.vmem [resolvable:$true] %s261
          %264 = dma.hbm_to_vmem [thread:$0]  %s259, 128, %s262, %s251
        $region40: #{tpu_custom_call.1} parent=35 // pred_fallthru
          _
      $region36: #{tpu_custom_call.1} parent=5 // pred_fallthru
        _
      %p265 = scmp.le.s32.totalorder 1, %s20
      %p266 = scmp.lt.s32.totalorder %s20, 3
      %p267 = pnand %p265, %p266
      %p268 = pneg %p267
      // Predicated region
      $region41: #{tpu_custom_call.1} parent=5 // pred_check
        _
      $region42: #{tpu_custom_call.1} parent=5 // pred_check_branch
        %270 = sbr.rel (%p267) target = $region44
      $region43: #{tpu_custom_call.1} parent=5 // pred_region
        %s271 = ssub.s32 %s20, 1
        %s272 = sand.u32 %s33, 1
        %s273 = scalar_lea.sflag [#allocation4], %s272
        %s274 = sand.u32 %s33, 1
        %s275 = smul.addr %s274, 8
        %s276 = scalar_lea.vmem [#allocation3], %s275
        // Predicated region
        $region45: #{tpu_custom_call.1} parent=43 // pred_check
          %p277 = pneg %p46
        $region46: #{tpu_custom_call.1} parent=43 // pred_check_branch
          %279 = sbr.rel (%p277) target = $region48
        $region47: #{tpu_custom_call.1} parent=43 // pred_region
          %280 = dma.done %s273, 128
        $region48: #{tpu_custom_call.1} parent=43 // pred_fallthru
          _
        // Predicated region
        $region49: #{tpu_custom_call.1} parent=43 // pred_check
          %p281 = pneg %p109
        $region50: #{tpu_custom_call.1} parent=43 // pred_check_branch
          %283 = sbr.rel (%p281) target = $region52
        $region51: #{tpu_custom_call.1} parent=43 // pred_region
          %284 = dma.done [#allocation6], 512
        $region52: #{tpu_custom_call.1} parent=43 // pred_fallthru
          _
        %s285 = sand.u32 %s33, 1
        %s286 = scalar_lea.sflag [#allocation4], %s285
        %s287 = sand.u32 %s33, 1
        %s288 = smul.addr %s287, 8
        %s289 = scalar_lea.vmem [#allocation3], %s288
        %p290 = pneg %p46
        %p291 = pneg %p43
        %p292 = pneg %p67
        %p293 = pneg %p64
        %p294 = pneg %p88
        %p295 = pneg %p85
        %p296 = pneg %p109
        %p297 = pneg %p106
        %p298 = pneg %p130
        %p299 = pneg %p127
        %p300 = pneg %p151
        %p301 = pneg %p148
        %p302 = pneg %p177
        %p303 = pneg %p174
        %p304 = scmp.lt.s32.totalorder %s25, 1
        %s305 = scalar_select %p304, %s25, 1
        %s306 = scalar_lea.vmem %s6, %s305
        %p307 = pneg %p203
        %p308 = pneg %p200
        %p309 = scmp.lt.s32.totalorder %s25, 1
        %s310 = scalar_select %p309, %s25, 1
        %s311 = smul.addr %s310, 8
        %s312 = scalar_lea.vmem %s7, %s311
        %p313 = scmp.lt.s32.totalorder %s25, 1
        %s314 = scalar_select %p313, %s25, 1
        %s315 = scalar_lea.vmem %s6, %s314
        %p316 = scmp.lt.s32.totalorder %s25, 1
        %s317 = scalar_select %p316, %s25, 1
        %s318 = smul.addr %s317, 8
        %s319 = scalar_lea.vmem %s7, %s318
        %v320 = vld [vmem:[%s276] sm:$0xff]
        %v321 = vld [vmem:[%s1] sm:$0xff]
        %v322 = vld [vmem:[%s1 + $0x8] sm:$0xff]
        %v323 = vld [vmem:[%s1 + $0x10] sm:$0xff]
        %v324 = vld [vmem:[%s1 + $0x18] sm:$0xff]
        %vm325 = vcmask 261120
        %v327 = vsel %vm325, %v320, 0
        %329 = vmatprep.subr.mxu0 0.0
        %330 = vmatpush1.msra.mxu0 0.0
        %331 = vmatprep.subr.mxu0 0.0
        %332 = vmatpush1.msra.mxu0 0.0
        %333 = vmatprep.subr.mxu0 0.0
        %334 = vmatpush1.msra.mxu0 0.0
        %335 = vmatprep.subr.mxu0 0.0
        %336 = vmatpush1.msra.mxu0 0.0
        %337 = vmatprep.subr.mxu0 0.0
        %338 = vmatpush1.msra.mxu0 0.0
        %339 = vmatprep.subr.mxu0 0.0
        %340 = vmatpush1.msra.mxu0 0.0
        %341 = vmatprep.subr.mxu0 0.0
        %342 = vmatpush1.msra.mxu0 0.0
        %343 = vmatprep.subr.mxu0 0.0
        %344 = vmatpush1.msra.mxu0 0.0
        %345 = vmatprep.subr.mxu0 0.0
        %346 = vmatpush1.msra.mxu0 0.0
        %347 = vmatprep.subr.mxu0 0.0
        %348 = vmatpush1.msra.mxu0 0.0
        %349 = vmatprep.subr.mxu0 0.0
        %350 = vmatpush1.msra.mxu0 0.0
        %351 = vmatprep.subr.mxu0 0.0
        %352 = vmatpush1.msra.mxu0 0.0
        %353 = vmatprep.subr.mxu0 0.0
        %354 = vmatpush1.msra.mxu0 %v324
        %355 = vmatprep.subr.mxu0 0.0
        %356 = vmatpush1.msra.mxu0 %v323
        %357 = vmatprep.subr.mxu0 0.0
        %358 = vmatpush1.msra.mxu0 %v322
        %359 = vmatprep.subr.mxu0 0.0
        %360 = vmatpush1.msra.mxu0 %v321
        %361 = vmatprep.subr.mxu0 0.0
        %362 = vmatpush2.msra.mxu0 0.0
        %363 = vmatprep.subr.mxu0 0.0
        %364 = vmatpush2.msra.mxu0 0.0
        %365 = vmatprep.subr.mxu0 0.0
        %366 = vmatpush2.msra.mxu0 0.0
        %367 = vmatprep.subr.mxu0 0.0
        %368 = vmatpush2.msra.mxu0 0.0
        %369 = vmatprep.subr.mxu0 0.0
        %370 = vmatpush2.msra.mxu0 0.0
        %371 = vmatprep.subr.mxu0 0.0
        %372 = vmatpush2.msra.mxu0 0.0
        %373 = vmatprep.subr.mxu0 0.0
        %374 = vmatpush2.msra.mxu0 0.0
        %375 = vmatprep.subr.mxu0 0.0
        %376 = vmatpush2.msra.mxu0 0.0
        %377 = vmatprep.subr.mxu0 0.0
        %378 = vmatpush2.msra.mxu0 0.0
        %379 = vmatprep.subr.mxu0 0.0
        %380 = vmatpush2.msra.mxu0 0.0
        %381 = vmatprep.subr.mxu0 0.0
        %382 = vmatpush2.msra.mxu0 0.0
        %383 = vmatprep.subr.mxu0 0.0
        %384 = vmatpush2.msra.mxu0 0.0
        %385 = vmatprep.subr.mxu0 0.0
        %386 = vmatpush2.msra.mxu0 0.0
        %387 = vmatprep.subr.mxu0 0.0
        %388 = vmatpush2.msra.mxu0 0.0
        %389 = vmatprep.subr.mxu0 0.0
        %390 = vmatpush2.msra.mxu0 0.0
        %391 = vmatprep.subr.mxu0 0.0
        %392 = vmatpush2.msra.mxu0 0.0
        %393 = vmatprep.mubr.f32.mxu0 0.0
        %394 = vmatmul.mubr.f32.gmra.mxu0 %v327
        %v395 = vpop.f32.mrf.mxu0
        %v396 = vadd.f32 0.0, %v395
        %v397 = vpop.f32.mrf.mxu0
        %398 = vdwg.mxu0
        %v399 = vld [vmem:[%s2] sm:$0xff]
        %v400 = vld [vmem:[%s2 + $0x8] sm:$0xff]
        %v401 = vld [vmem:[%s2 + $0x10] sm:$0xff]
        %v402 = vld [vmem:[%s2 + $0x18] sm:$0xff]
        %403 = vmatprep.subr.mxu0 0.0
        %404 = vmatpush1.msra.mxu0 0.0
        %405 = vmatprep.subr.mxu0 0.0
        %406 = vmatpush1.msra.mxu0 0.0
        %407 = vmatprep.subr.mxu0 0.0
        %408 = vmatpush1.msra.mxu0 0.0
        %409 = vmatprep.subr.mxu0 0.0
        %410 = vmatpush1.msra.mxu0 0.0
        %411 = vmatprep.subr.mxu0 0.0
        %412 = vmatpush1.msra.mxu0 0.0
        %413 = vmatprep.subr.mxu0 0.0
        %414 = vmatpush1.msra.mxu0 0.0
        %415 = vmatprep.subr.mxu0 0.0
        %416 = vmatpush1.msra.mxu0 0.0
        %417 = vmatprep.subr.mxu0 0.0
        %418 = vmatpush1.msra.mxu0 0.0
        %419 = vmatprep.subr.mxu0 0.0
        %420 = vmatpush1.msra.mxu0 0.0
        %421 = vmatprep.subr.mxu0 0.0
        %422 = vmatpush1.msra.mxu0 0.0
        %423 = vmatprep.subr.mxu0 0.0
        %424 = vmatpush1.msra.mxu0 0.0
        %425 = vmatprep.subr.mxu0 0.0
        %426 = vmatpush1.msra.mxu0 0.0
        %427 = vmatprep.subr.mxu0 0.0
        %428 = vmatpush1.msra.mxu0 %v402
        %429 = vmatprep.subr.mxu0 0.0
        %430 = vmatpush1.msra.mxu0 %v401
        %431 = vmatprep.subr.mxu0 0.0
        %432 = vmatpush1.msra.mxu0 %v400
        %433 = vmatprep.subr.mxu0 0.0
        %434 = vmatpush1.msra.mxu0 %v399
        %435 = vmatprep.subr.mxu0 0.0
        %436 = vmatpush2.msra.mxu0 0.0
        %437 = vmatprep.subr.mxu0 0.0
        %438 = vmatpush2.msra.mxu0 0.0
        %439 = vmatprep.subr.mxu0 0.0
        %440 = vmatpush2.msra.mxu0 0.0
        %441 = vmatprep.subr.mxu0 0.0
        %442 = vmatpush2.msra.mxu0 0.0
        %443 = vmatprep.subr.mxu0 0.0
        %444 = vmatpush2.msra.mxu0 0.0
        %445 = vmatprep.subr.mxu0 0.0
        %446 = vmatpush2.msra.mxu0 0.0
        %447 = vmatprep.subr.mxu0 0.0
        %448 = vmatpush2.msra.mxu0 0.0
        %449 = vmatprep.subr.mxu0 0.0
        %450 = vmatpush2.msra.mxu0 0.0
        %451 = vmatprep.subr.mxu0 0.0
        %452 = vmatpush2.msra.mxu0 0.0
        %453 = vmatprep.subr.mxu0 0.0
        %454 = vmatpush2.msra.mxu0 0.0
        %455 = vmatprep.subr.mxu0 0.0
        %456 = vmatpush2.msra.mxu0 0.0
        %457 = vmatprep.subr.mxu0 0.0
        %458 = vmatpush2.msra.mxu0 0.0
        %459 = vmatprep.subr.mxu0 0.0
        %460 = vmatpush2.msra.mxu0 0.0
        %461 = vmatprep.subr.mxu0 0.0
        %462 = vmatpush2.msra.mxu0 0.0
        %463 = vmatprep.subr.mxu0 0.0
        %464 = vmatpush2.msra.mxu0 0.0
        %465 = vmatprep.subr.mxu0 0.0
        %466 = vmatpush2.msra.mxu0 0.0
        %467 = vmatprep.mubr.f32.mxu0 0.0
        %468 = vmatmul.mubr.f32.gmra.mxu0 %v327
        %v469 = vpop.f32.mrf.mxu0
        %v470 = vadd.f32 0.0, %v469
        %v471 = vpop.f32.mrf.mxu0
        %472 = vdwg.mxu0
        %v473 = vld [vmem:[#allocation5] sm:$0xff]
        %v474 = vld [vmem:[#allocation5 + $0x8] sm:$0xff]
        %v475 = vld [vmem:[#allocation5 + $0x10] sm:$0xff]
        %v476 = vld [vmem:[#allocation5 + $0x18] sm:$0xff]
        %477 = vmatprep.subr.mxu0 0.0
        %478 = vmatpush1.msra.mxu0 0.0
        %479 = vmatprep.subr.mxu0 0.0
        %480 = vmatpush1.msra.mxu0 0.0
        %481 = vmatprep.subr.mxu0 0.0
        %482 = vmatpush1.msra.mxu0 0.0
        %483 = vmatprep.subr.mxu0 0.0
        %484 = vmatpush1.msra.mxu0 0.0
        %485 = vmatprep.subr.mxu0 0.0
        %486 = vmatpush1.msra.mxu0 0.0
        %487 = vmatprep.subr.mxu0 0.0
        %488 = vmatpush1.msra.mxu0 0.0
        %489 = vmatprep.subr.mxu0 0.0
        %490 = vmatpush1.msra.mxu0 0.0
        %491 = vmatprep.subr.mxu0 0.0
        %492 = vmatpush1.msra.mxu0 0.0
        %493 = vmatprep.subr.mxu0 0.0
        %494 = vmatpush1.msra.mxu0 0.0
        %495 = vmatprep.subr.mxu0 0.0
        %496 = vmatpush1.msra.mxu0 0.0
        %497 = vmatprep.subr.mxu0 0.0
        %498 = vmatpush1.msra.mxu0 0.0
        %499 = vmatprep.subr.mxu0 0.0
        %500 = vmatpush1.msra.mxu0 0.0
        %501 = vmatprep.subr.mxu0 0.0
        %502 = vmatpush1.msra.mxu0 %v476
        %503 = vmatprep.subr.mxu0 0.0
        %504 = vmatpush1.msra.mxu0 %v475
        %505 = vmatprep.subr.mxu0 0.0
        %506 = vmatpush1.msra.mxu0 %v474
        %507 = vmatprep.subr.mxu0 0.0
        %508 = vmatpush1.msra.mxu0 %v473
        %509 = vmatprep.subr.mxu0 0.0
        %510 = vmatpush2.msra.mxu0 0.0
        %511 = vmatprep.subr.mxu0 0.0
        %512 = vmatpush2.msra.mxu0 0.0
        %513 = vmatprep.subr.mxu0 0.0
        %514 = vmatpush2.msra.mxu0 0.0
        %515 = vmatprep.subr.mxu0 0.0
        %516 = vmatpush2.msra.mxu0 0.0
        %517 = vmatprep.subr.mxu0 0.0
        %518 = vmatpush2.msra.mxu0 0.0
        %519 = vmatprep.subr.mxu0 0.0
        %520 = vmatpush2.msra.mxu0 0.0
        %521 = vmatprep.subr.mxu0 0.0
        %522 = vmatpush2.msra.mxu0 0.0
        %523 = vmatprep.subr.mxu0 0.0
        %524 = vmatpush2.msra.mxu0 0.0
        %525 = vmatprep.subr.mxu0 0.0
        %526 = vmatpush2.msra.mxu0 0.0
        %527 = vmatprep.subr.mxu0 0.0
        %528 = vmatpush2.msra.mxu0 0.0
        %529 = vmatprep.subr.mxu0 0.0
        %530 = vmatpush2.msra.mxu0 0.0
        %531 = vmatprep.subr.mxu0 0.0
        %532 = vmatpush2.msra.mxu0 0.0
        %533 = vmatprep.subr.mxu0 0.0
        %534 = vmatpush2.msra.mxu0 0.0
        %535 = vmatprep.subr.mxu0 0.0
        %536 = vmatpush2.msra.mxu0 0.0
        %537 = vmatprep.subr.mxu0 0.0
        %538 = vmatpush2.msra.mxu0 0.0
        %539 = vmatprep.subr.mxu0 0.0
        %540 = vmatpush2.msra.mxu0 0.0
        %541 = vmatprep.mubr.f32.mxu0 0.0
        %542 = vmatmul.mubr.f32.gmra.mxu0 %v327
        %v543 = vpop.f32.mrf.mxu0
        %v544 = vadd.f32 0.0, %v543
        %v545 = vpop.f32.mrf.mxu0
        %546 = vdwg.mxu0
        %vm547 = vcmask 64512
        %v549 = vsel %vm547, %v396, 0
        %v552 = vsel %vm547, %v470, 0
        %554 = vmatprep.subr.mxu0 0.0
        %555 = vmatpush1.xpose.msra.mxu0 0.0
        %556 = vmatprep.subr.mxu0 0.0
        %557 = vmatpush1.xpose.msra.mxu0 0.0
        %558 = vmatprep.subr.mxu0 0.0
        %559 = vmatpush1.xpose.msra.mxu0 0.0
        %560 = vmatprep.subr.mxu0 0.0
        %561 = vmatpush1.xpose.msra.mxu0 0.0
        %562 = vmatprep.subr.mxu0 0.0
        %563 = vmatpush1.xpose.msra.mxu0 0.0
        %564 = vmatprep.subr.mxu0 0.0
        %565 = vmatpush1.xpose.msra.mxu0 0.0
        %566 = vmatprep.subr.mxu0 0.0
        %567 = vmatpush1.xpose.msra.mxu0 0.0
        %568 = vmatprep.subr.mxu0 0.0
        %569 = vmatpush1.xpose.msra.mxu0 0.0
        %570 = vmatprep.subr.mxu0 0.0
        %571 = vmatpush1.xpose.msra.mxu0 0.0
        %572 = vmatprep.subr.mxu0 0.0
        %573 = vmatpush1.xpose.msra.mxu0 0.0
        %574 = vmatprep.subr.mxu0 0.0
        %575 = vmatpush1.xpose.msra.mxu0 0.0
        %576 = vmatprep.subr.mxu0 0.0
        %577 = vmatpush1.xpose.msra.mxu0 0.0
        %578 = vmatprep.subr.mxu0 0.0
        %579 = vmatpush1.xpose.msra.mxu0 0.0
        %580 = vmatprep.subr.mxu0 0.0
        %581 = vmatpush1.xpose.msra.mxu0 0.0
        %582 = vmatprep.subr.mxu0 0.0
        %583 = vmatpush1.xpose.msra.mxu0 0.0
        %584 = vmatprep.subr.mxu0 0.0
        %585 = vmatpush1.xpose.msra.mxu0 %v552
        %586 = vmatprep.subr.mxu0 0.0
        %587 = vmatpush2.xpose.msra.mxu0 0.0
        %588 = vmatprep.subr.mxu0 0.0
        %589 = vmatpush2.xpose.msra.mxu0 0.0
        %590 = vmatprep.subr.mxu0 0.0
        %591 = vmatpush2.xpose.msra.mxu0 0.0
        %592 = vmatprep.subr.mxu0 0.0
        %593 = vmatpush2.xpose.msra.mxu0 0.0
        %594 = vmatprep.subr.mxu0 0.0
        %595 = vmatpush2.xpose.msra.mxu0 0.0
        %596 = vmatprep.subr.mxu0 0.0
        %597 = vmatpush2.xpose.msra.mxu0 0.0
        %598 = vmatprep.subr.mxu0 0.0
        %599 = vmatpush2.xpose.msra.mxu0 0.0
        %600 = vmatprep.subr.mxu0 0.0
        %601 = vmatpush2.xpose.msra.mxu0 0.0
        %602 = vmatprep.subr.mxu0 0.0
        %603 = vmatpush2.xpose.msra.mxu0 0.0
        %604 = vmatprep.subr.mxu0 0.0
        %605 = vmatpush2.xpose.msra.mxu0 0.0
        %606 = vmatprep.subr.mxu0 0.0
        %607 = vmatpush2.xpose.msra.mxu0 0.0
        %608 = vmatprep.subr.mxu0 0.0
        %609 = vmatpush2.xpose.msra.mxu0 0.0
        %610 = vmatprep.subr.mxu0 0.0
        %611 = vmatpush2.xpose.msra.mxu0 0.0
        %612 = vmatprep.subr.mxu0 0.0
        %613 = vmatpush2.xpose.msra.mxu0 0.0
        %614 = vmatprep.subr.mxu0 0.0
        %615 = vmatpush2.xpose.msra.mxu0 0.0
        %616 = vmatprep.subr.mxu0 0.0
        %617 = vmatpush2.xpose.msra.mxu0 0.0
        %618 = vmatprep.mubr.f32.mxu0 0.0
        %619 = vmatmul.mubr.f32.gmra.mxu0 %v549
        %v620 = vpop.f32.mrf.mxu0
        %v621 = vadd.f32 0.0, %v620
        %v622 = vpop.f32.mrf.mxu0
        %623 = vdwg.mxu0
        %v624 = vmul.f32 %v621, 0.35355338
        %v625 = vsel %vm547, %v624, -inf
        %626 = vmax.xlane.f32.xlu0 %v625
        %v627 = vpop.xlane.xlu0 %626
        %v628 = vsub.f32 %v624, %v627
        %v629 = vmul.f32 %v628, 1.442695
        %v630 = vpow.pop %v629
        %v631 = vsel %vm547, %v630, 0.0
        %632 = vadd.xlane.f32.xlu0 %v631
        %v633 = vpop.xlane.xlu0 %632
        %v634 = vrcp.pop %v633
        %v635 = vmul.f32 %v630, %v634
        %v637 = vsel %vm547, %v635, 0
        %639 = vmatprep.subr.mxu0 0.0
        %640 = vmatpush1.msra.mxu0 0.0
        %641 = vmatprep.subr.mxu0 0.0
        %642 = vmatpush1.msra.mxu0 0.0
        %643 = vmatprep.subr.mxu0 0.0
        %644 = vmatpush1.msra.mxu0 0.0
        %645 = vmatprep.subr.mxu0 0.0
        %646 = vmatpush1.msra.mxu0 0.0
        %647 = vmatprep.subr.mxu0 0.0
        %648 = vmatpush1.msra.mxu0 0.0
        %649 = vmatprep.subr.mxu0 0.0
        %650 = vmatpush1.msra.mxu0 0.0
        %651 = vmatprep.subr.mxu0 0.0
        %652 = vmatpush1.msra.mxu0 0.0
        %653 = vmatprep.subr.mxu0 0.0
        %654 = vmatpush1.msra.mxu0 0.0
        %655 = vmatprep.subr.mxu0 0.0
        %656 = vmatpush1.msra.mxu0 0.0
        %657 = vmatprep.subr.mxu0 0.0
        %658 = vmatpush1.msra.mxu0 0.0
        %659 = vmatprep.subr.mxu0 0.0
        %660 = vmatpush1.msra.mxu0 0.0
        %661 = vmatprep.subr.mxu0 0.0
        %662 = vmatpush1.msra.mxu0 0.0
        %663 = vmatprep.subr.mxu0 0.0
        %664 = vmatpush1.msra.mxu0 0.0
        %665 = vmatprep.subr.mxu0 0.0
        %666 = vmatpush1.msra.mxu0 0.0
        %667 = vmatprep.subr.mxu0 0.0
        %668 = vmatpush1.msra.mxu0 0.0
        %669 = vmatprep.subr.mxu0 0.0
        %670 = vmatpush1.msra.mxu0 %v544
        %671 = vmatprep.subr.mxu0 0.0
        %672 = vmatpush2.msra.mxu0 0.0
        %673 = vmatprep.subr.mxu0 0.0
        %674 = vmatpush2.msra.mxu0 0.0
        %675 = vmatprep.subr.mxu0 0.0
        %676 = vmatpush2.msra.mxu0 0.0
        %677 = vmatprep.subr.mxu0 0.0
        %678 = vmatpush2.msra.mxu0 0.0
        %679 = vmatprep.subr.mxu0 0.0
        %680 = vmatpush2.msra.mxu0 0.0
        %681 = vmatprep.subr.mxu0 0.0
        %682 = vmatpush2.msra.mxu0 0.0
        %683 = vmatprep.subr.mxu0 0.0
        %684 = vmatpush2.msra.mxu0 0.0
        %685 = vmatprep.subr.mxu0 0.0
        %686 = vmatpush2.msra.mxu0 0.0
        %687 = vmatprep.subr.mxu0 0.0
        %688 = vmatpush2.msra.mxu0 0.0
        %689 = vmatprep.subr.mxu0 0.0
        %690 = vmatpush2.msra.mxu0 0.0
        %691 = vmatprep.subr.mxu0 0.0
        %692 = vmatpush2.msra.mxu0 0.0
        %693 = vmatprep.subr.mxu0 0.0
        %694 = vmatpush2.msra.mxu0 0.0
        %695 = vmatprep.subr.mxu0 0.0
        %696 = vmatpush2.msra.mxu0 0.0
        %697 = vmatprep.subr.mxu0 0.0
        %698 = vmatpush2.msra.mxu0 0.0
        %699 = vmatprep.subr.mxu0 0.0
        %700 = vmatpush2.msra.mxu0 0.0
        %701 = vmatprep.subr.mxu0 0.0
        %702 = vmatpush2.msra.mxu0 0.0
        %703 = vmatprep.mubr.f32.mxu0 0.0
        %704 = vmatmul.mubr.f32.gmra.mxu0 %v637
        %v705 = vpop.f32.mrf.mxu0
        %v706 = vadd.f32 0.0, %v705
        %v707 = vpop.f32.mrf.mxu0
        %708 = vdwg.mxu0
        %709 = vrot.lane.b32.xlu0 %v396, 120
        %v710 = vpop.permute.xlu0 %709
        %v711 = vsel %vm547, %v710, 0
        %713 = vmatprep.subr.mxu0 0.0
        %714 = vmatpush1.xpose.msra.mxu0 0.0
        %715 = vmatprep.subr.mxu0 0.0
        %716 = vmatpush1.xpose.msra.mxu0 0.0
        %717 = vmatprep.subr.mxu0 0.0
        %718 = vmatpush1.xpose.msra.mxu0 0.0
        %719 = vmatprep.subr.mxu0 0.0
        %720 = vmatpush1.xpose.msra.mxu0 0.0
        %721 = vmatprep.subr.mxu0 0.0
        %722 = vmatpush1.xpose.msra.mxu0 0.0
        %723 = vmatprep.subr.mxu0 0.0
        %724 = vmatpush1.xpose.msra.mxu0 0.0
        %725 = vmatprep.subr.mxu0 0.0
        %726 = vmatpush1.xpose.msra.mxu0 0.0
        %727 = vmatprep.subr.mxu0 0.0
        %728 = vmatpush1.xpose.msra.mxu0 0.0
        %729 = vmatprep.subr.mxu0 0.0
        %730 = vmatpush1.xpose.msra.mxu0 0.0
        %731 = vmatprep.subr.mxu0 0.0
        %732 = vmatpush1.xpose.msra.mxu0 0.0
        %733 = vmatprep.subr.mxu0 0.0
        %734 = vmatpush1.xpose.msra.mxu0 0.0
        %735 = vmatprep.subr.mxu0 0.0
        %736 = vmatpush1.xpose.msra.mxu0 0.0
        %737 = vmatprep.subr.mxu0 0.0
        %738 = vmatpush1.xpose.msra.mxu0 0.0
        %739 = vmatprep.subr.mxu0 0.0
        %740 = vmatpush1.xpose.msra.mxu0 0.0
        %741 = vmatprep.subr.mxu0 0.0
        %742 = vmatpush1.xpose.msra.mxu0 0.0
        %743 = vmatprep.subr.mxu0 0.0
        %744 = vmatpush1.xpose.msra.mxu0 %v552
        %745 = vmatprep.subr.mxu0 0.0
        %746 = vmatpush2.xpose.msra.mxu0 0.0
        %747 = vmatprep.subr.mxu0 0.0
        %748 = vmatpush2.xpose.msra.mxu0 0.0
        %749 = vmatprep.subr.mxu0 0.0
        %750 = vmatpush2.xpose.msra.mxu0 0.0
        %751 = vmatprep.subr.mxu0 0.0
        %752 = vmatpush2.xpose.msra.mxu0 0.0
        %753 = vmatprep.subr.mxu0 0.0
        %754 = vmatpush2.xpose.msra.mxu0 0.0
        %755 = vmatprep.subr.mxu0 0.0
        %756 = vmatpush2.xpose.msra.mxu0 0.0
        %757 = vmatprep.subr.mxu0 0.0
        %758 = vmatpush2.xpose.msra.mxu0 0.0
        %759 = vmatprep.subr.mxu0 0.0
        %760 = vmatpush2.xpose.msra.mxu0 0.0
        %761 = vmatprep.subr.mxu0 0.0
        %762 = vmatpush2.xpose.msra.mxu0 0.0
        %763 = vmatprep.subr.mxu0 0.0
        %764 = vmatpush2.xpose.msra.mxu0 0.0
        %765 = vmatprep.subr.mxu0 0.0
        %766 = vmatpush2.xpose.msra.mxu0 0.0
        %767 = vmatprep.subr.mxu0 0.0
        %768 = vmatpush2.xpose.msra.mxu0 0.0
        %769 = vmatprep.subr.mxu0 0.0
        %770 = vmatpush2.xpose.msra.mxu0 0.0
        %771 = vmatprep.subr.mxu0 0.0
        %772 = vmatpush2.xpose.msra.mxu0 0.0
        %773 = vmatprep.subr.mxu0 0.0
        %774 = vmatpush2.xpose.msra.mxu0 0.0
        %775 = vmatprep.subr.mxu0 0.0
        %776 = vmatpush2.xpose.msra.mxu0 0.0
        %777 = vmatprep.mubr.f32.mxu0 0.0
        %778 = vmatmul.mubr.f32.gmra.mxu0 %v711
        %v779 = vpop.f32.mrf.mxu0
        %v780 = vadd.f32 0.0, %v779
        %v781 = vpop.f32.mrf.mxu0
        %782 = vdwg.mxu0
        %v783 = vmul.f32 %v780, 0.35355338
        %v784 = vsel %vm547, %v783, -inf
        %785 = vmax.xlane.f32.xlu0 %v784
        %v786 = vpop.xlane.xlu0 %785
        %v787 = vsub.f32 %v783, %v786
        %v788 = vmul.f32 %v787, 1.442695
        %v789 = vpow.pop %v788
        %v790 = vsel %vm547, %v789, 0.0
        %791 = vadd.xlane.f32.xlu0 %v790
        %v792 = vpop.xlane.xlu0 %791
        %v793 = vrcp.pop %v792
        %v794 = vmul.f32 %v789, %v793
        %v796 = vsel %vm547, %v794, 0
        %798 = vmatprep.subr.mxu0 0.0
        %799 = vmatpush1.msra.mxu0 0.0
        %800 = vmatprep.subr.mxu0 0.0
        %801 = vmatpush1.msra.mxu0 0.0
        %802 = vmatprep.subr.mxu0 0.0
        %803 = vmatpush1.msra.mxu0 0.0
        %804 = vmatprep.subr.mxu0 0.0
        %805 = vmatpush1.msra.mxu0 0.0
        %806 = vmatprep.subr.mxu0 0.0
        %807 = vmatpush1.msra.mxu0 0.0
        %808 = vmatprep.subr.mxu0 0.0
        %809 = vmatpush1.msra.mxu0 0.0
        %810 = vmatprep.subr.mxu0 0.0
        %811 = vmatpush1.msra.mxu0 0.0
        %812 = vmatprep.subr.mxu0 0.0
        %813 = vmatpush1.msra.mxu0 0.0
        %814 = vmatprep.subr.mxu0 0.0
        %815 = vmatpush1.msra.mxu0 0.0
        %816 = vmatprep.subr.mxu0 0.0
        %817 = vmatpush1.msra.mxu0 0.0
        %818 = vmatprep.subr.mxu0 0.0
        %819 = vmatpush1.msra.mxu0 0.0
        %820 = vmatprep.subr.mxu0 0.0
        %821 = vmatpush1.msra.mxu0 0.0
        %822 = vmatprep.subr.mxu0 0.0
        %823 = vmatpush1.msra.mxu0 0.0
        %824 = vmatprep.subr.mxu0 0.0
        %825 = vmatpush1.msra.mxu0 0.0
        %826 = vmatprep.subr.mxu0 0.0
        %827 = vmatpush1.msra.mxu0 0.0
        %828 = vmatprep.subr.mxu0 0.0
        %829 = vmatpush1.msra.mxu0 %v544
        %830 = vmatprep.subr.mxu0 0.0
        %831 = vmatpush2.msra.mxu0 0.0
        %832 = vmatprep.subr.mxu0 0.0
        %833 = vmatpush2.msra.mxu0 0.0
        %834 = vmatprep.subr.mxu0 0.0
        %835 = vmatpush2.msra.mxu0 0.0
        %836 = vmatprep.subr.mxu0 0.0
        %837 = vmatpush2.msra.mxu0 0.0
        %838 = vmatprep.subr.mxu0 0.0
        %839 = vmatpush2.msra.mxu0 0.0
        %840 = vmatprep.subr.mxu0 0.0
        %841 = vmatpush2.msra.mxu0 0.0
        %842 = vmatprep.subr.mxu0 0.0
        %843 = vmatpush2.msra.mxu0 0.0
        %844 = vmatprep.subr.mxu0 0.0
        %845 = vmatpush2.msra.mxu0 0.0
        %846 = vmatprep.subr.mxu0 0.0
        %847 = vmatpush2.msra.mxu0 0.0
        %848 = vmatprep.subr.mxu0 0.0
        %849 = vmatpush2.msra.mxu0 0.0
        %850 = vmatprep.subr.mxu0 0.0
        %851 = vmatpush2.msra.mxu0 0.0
        %852 = vmatprep.subr.mxu0 0.0
        %853 = vmatpush2.msra.mxu0 0.0
        %854 = vmatprep.subr.mxu0 0.0
        %855 = vmatpush2.msra.mxu0 0.0
        %856 = vmatprep.subr.mxu0 0.0
        %857 = vmatpush2.msra.mxu0 0.0
        %858 = vmatprep.subr.mxu0 0.0
        %859 = vmatpush2.msra.mxu0 0.0
        %860 = vmatprep.subr.mxu0 0.0
        %861 = vmatpush2.msra.mxu0 0.0
        %862 = vmatprep.mubr.f32.mxu0 0.0
        %863 = vmatmul.mubr.f32.gmra.mxu0 %v796
        %v864 = vpop.f32.mrf.mxu0
        %v865 = vadd.f32 0.0, %v864
        %v866 = vpop.f32.mrf.mxu0
        %867 = vdwg.mxu0
        %868 = vrot.lane.b32.xlu0 %v396, 112
        %v869 = vpop.permute.xlu0 %868
        %870 = vrot.lane.b32.xlu0 %v470, 120
        %v871 = vpop.permute.xlu0 %870
        %v872 = vsel %vm547, %v869, 0
        %v874 = vsel %vm547, %v871, 0
        %876 = vmatprep.subr.mxu0 0.0
        %877 = vmatpush1.xpose.msra.mxu0 0.0
        %878 = vmatprep.subr.mxu0 0.0
        %879 = vmatpush1.xpose.msra.mxu0 0.0
        %880 = vmatprep.subr.mxu0 0.0
        %881 = vmatpush1.xpose.msra.mxu0 0.0
        %882 = vmatprep.subr.mxu0 0.0
        %883 = vmatpush1.xpose.msra.mxu0 0.0
        %884 = vmatprep.subr.mxu0 0.0
        %885 = vmatpush1.xpose.msra.mxu0 0.0
        %886 = vmatprep.subr.mxu0 0.0
        %887 = vmatpush1.xpose.msra.mxu0 0.0
        %888 = vmatprep.subr.mxu0 0.0
        %889 = vmatpush1.xpose.msra.mxu0 0.0
        %890 = vmatprep.subr.mxu0 0.0
        %891 = vmatpush1.xpose.msra.mxu0 0.0
        %892 = vmatprep.subr.mxu0 0.0
        %893 = vmatpush1.xpose.msra.mxu0 0.0
        %894 = vmatprep.subr.mxu0 0.0
        %895 = vmatpush1.xpose.msra.mxu0 0.0
        %896 = vmatprep.subr.mxu0 0.0
        %897 = vmatpush1.xpose.msra.mxu0 0.0
        %898 = vmatprep.subr.mxu0 0.0
        %899 = vmatpush1.xpose.msra.mxu0 0.0
        %900 = vmatprep.subr.mxu0 0.0
        %901 = vmatpush1.xpose.msra.mxu0 0.0
        %902 = vmatprep.subr.mxu0 0.0
        %903 = vmatpush1.xpose.msra.mxu0 0.0
        %904 = vmatprep.subr.mxu0 0.0
        %905 = vmatpush1.xpose.msra.mxu0 0.0
        %906 = vmatprep.subr.mxu0 0.0
        %907 = vmatpush1.xpose.msra.mxu0 %v874
        %908 = vmatprep.subr.mxu0 0.0
        %909 = vmatpush2.xpose.msra.mxu0 0.0
        %910 = vmatprep.subr.mxu0 0.0
        %911 = vmatpush2.xpose.msra.mxu0 0.0
        %912 = vmatprep.subr.mxu0 0.0
        %913 = vmatpush2.xpose.msra.mxu0 0.0
        %914 = vmatprep.subr.mxu0 0.0
        %915 = vmatpush2.xpose.msra.mxu0 0.0
        %916 = vmatprep.subr.mxu0 0.0
        %917 = vmatpush2.xpose.msra.mxu0 0.0
        %918 = vmatprep.subr.mxu0 0.0
        %919 = vmatpush2.xpose.msra.mxu0 0.0
        %920 = vmatprep.subr.mxu0 0.0
        %921 = vmatpush2.xpose.msra.mxu0 0.0
        %922 = vmatprep.subr.mxu0 0.0
        %923 = vmatpush2.xpose.msra.mxu0 0.0
        %924 = vmatprep.subr.mxu0 0.0
        %925 = vmatpush2.xpose.msra.mxu0 0.0
        %926 = vmatprep.subr.mxu0 0.0
        %927 = vmatpush2.xpose.msra.mxu0 0.0
        %928 = vmatprep.subr.mxu0 0.0
        %929 = vmatpush2.xpose.msra.mxu0 0.0
        %930 = vmatprep.subr.mxu0 0.0
        %931 = vmatpush2.xpose.msra.mxu0 0.0
        %932 = vmatprep.subr.mxu0 0.0
        %933 = vmatpush2.xpose.msra.mxu0 0.0
        %934 = vmatprep.subr.mxu0 0.0
        %935 = vmatpush2.xpose.msra.mxu0 0.0
        %936 = vmatprep.subr.mxu0 0.0
        %937 = vmatpush2.xpose.msra.mxu0 0.0
        %938 = vmatprep.subr.mxu0 0.0
        %939 = vmatpush2.xpose.msra.mxu0 0.0
        %940 = vmatprep.mubr.f32.mxu0 0.0
        %941 = vmatmul.mubr.f32.gmra.mxu0 %v872
        %v942 = vpop.f32.mrf.mxu0
        %v943 = vadd.f32 0.0, %v942
        %v944 = vpop.f32.mrf.mxu0
        %945 = vdwg.mxu0
        %v946 = vmul.f32 %v943, 0.35355338
        %v947 = vsel %vm547, %v946, -inf
        %948 = vmax.xlane.f32.xlu0 %v947
        %v949 = vpop.xlane.xlu0 %948
        %v950 = vsub.f32 %v946, %v949
        %v951 = vmul.f32 %v950, 1.442695
        %v952 = vpow.pop %v951
        %v953 = vsel %vm547, %v952, 0.0
        %954 = vadd.xlane.f32.xlu0 %v953
        %v955 = vpop.xlane.xlu0 %954
        %v956 = vrcp.pop %v955
        %v957 = vmul.f32 %v952, %v956
        %959 = vrot.lane.b32.xlu0 %v544, 120
        %v960 = vpop.permute.xlu0 %959
        %v963 = vsel %vm547, %v957, 0
        %965 = vmatprep.subr.mxu0 0.0
        %966 = vmatpush1.msra.mxu0 0.0
        %967 = vmatprep.subr.mxu0 0.0
        %968 = vmatpush1.msra.mxu0 0.0
        %969 = vmatprep.subr.mxu0 0.0
        %970 = vmatpush1.msra.mxu0 0.0
        %971 = vmatprep.subr.mxu0 0.0
        %972 = vmatpush1.msra.mxu0 0.0
        %973 = vmatprep.subr.mxu0 0.0
        %974 = vmatpush1.msra.mxu0 0.0
        %975 = vmatprep.subr.mxu0 0.0
        %976 = vmatpush1.msra.mxu0 0.0
        %977 = vmatprep.subr.mxu0 0.0
        %978 = vmatpush1.msra.mxu0 0.0
        %979 = vmatprep.subr.mxu0 0.0
        %980 = vmatpush1.msra.mxu0 0.0
        %981 = vmatprep.subr.mxu0 0.0
        %982 = vmatpush1.msra.mxu0 0.0
        %983 = vmatprep.subr.mxu0 0.0
        %984 = vmatpush1.msra.mxu0 0.0
        %985 = vmatprep.subr.mxu0 0.0
        %986 = vmatpush1.msra.mxu0 0.0
        %987 = vmatprep.subr.mxu0 0.0
        %988 = vmatpush1.msra.mxu0 0.0
        %989 = vmatprep.subr.mxu0 0.0
        %990 = vmatpush1.msra.mxu0 0.0
        %991 = vmatprep.subr.mxu0 0.0
        %992 = vmatpush1.msra.mxu0 0.0
        %993 = vmatprep.subr.mxu0 0.0
        %994 = vmatpush1.msra.mxu0 0.0
        %995 = vmatprep.subr.mxu0 0.0
        %996 = vmatpush1.msra.mxu0 %v960
        %997 = vmatprep.subr.mxu0 0.0
        %998 = vmatpush2.msra.mxu0 0.0
        %999 = vmatprep.subr.mxu0 0.0
        %1000 = vmatpush2.msra.mxu0 0.0
        %1001 = vmatprep.subr.mxu0 0.0
        %1002 = vmatpush2.msra.mxu0 0.0
        %1003 = vmatprep.subr.mxu0 0.0
        %1004 = vmatpush2.msra.mxu0 0.0
        %1005 = vmatprep.subr.mxu0 0.0
        %1006 = vmatpush2.msra.mxu0 0.0
        %1007 = vmatprep.subr.mxu0 0.0
        %1008 = vmatpush2.msra.mxu0 0.0
        %1009 = vmatprep.subr.mxu0 0.0
        %1010 = vmatpush2.msra.mxu0 0.0
        %1011 = vmatprep.subr.mxu0 0.0
        %1012 = vmatpush2.msra.mxu0 0.0
        %1013 = vmatprep.subr.mxu0 0.0
        %1014 = vmatpush2.msra.mxu0 0.0
        %1015 = vmatprep.subr.mxu0 0.0
        %1016 = vmatpush2.msra.mxu0 0.0
        %1017 = vmatprep.subr.mxu0 0.0
        %1018 = vmatpush2.msra.mxu0 0.0
        %1019 = vmatprep.subr.mxu0 0.0
        %1020 = vmatpush2.msra.mxu0 0.0
        %1021 = vmatprep.subr.mxu0 0.0
        %1022 = vmatpush2.msra.mxu0 0.0
        %1023 = vmatprep.subr.mxu0 0.0
        %1024 = vmatpush2.msra.mxu0 0.0
        %1025 = vmatprep.subr.mxu0 0.0
        %1026 = vmatpush2.msra.mxu0 0.0
        %1027 = vmatprep.subr.mxu0 0.0
        %1028 = vmatpush2.msra.mxu0 0.0
        %1029 = vmatprep.mubr.f32.mxu0 0.0
        %1030 = vmatmul.mubr.f32.gmra.mxu0 %v963
        %v1031 = vpop.f32.mrf.mxu0
        %v1032 = vadd.f32 0.0, %v1031
        %v1033 = vpop.f32.mrf.mxu0
        %1034 = vdwg.mxu0
        %1035 = vrot.lane.b32.xlu0 %v396, 104
        %v1036 = vpop.permute.xlu0 %1035
        %v1037 = vsel %vm547, %v1036, 0
        %1039 = vmatprep.subr.mxu0 0.0
        %1040 = vmatpush1.xpose.msra.mxu0 0.0
        %1041 = vmatprep.subr.mxu0 0.0
        %1042 = vmatpush1.xpose.msra.mxu0 0.0
        %1043 = vmatprep.subr.mxu0 0.0
        %1044 = vmatpush1.xpose.msra.mxu0 0.0
        %1045 = vmatprep.subr.mxu0 0.0
        %1046 = vmatpush1.xpose.msra.mxu0 0.0
        %1047 = vmatprep.subr.mxu0 0.0
        %1048 = vmatpush1.xpose.msra.mxu0 0.0
        %1049 = vmatprep.subr.mxu0 0.0
        %1050 = vmatpush1.xpose.msra.mxu0 0.0
        %1051 = vmatprep.subr.mxu0 0.0
        %1052 = vmatpush1.xpose.msra.mxu0 0.0
        %1053 = vmatprep.subr.mxu0 0.0
        %1054 = vmatpush1.xpose.msra.mxu0 0.0
        %1055 = vmatprep.subr.mxu0 0.0
        %1056 = vmatpush1.xpose.msra.mxu0 0.0
        %1057 = vmatprep.subr.mxu0 0.0
        %1058 = vmatpush1.xpose.msra.mxu0 0.0
        %1059 = vmatprep.subr.mxu0 0.0
        %1060 = vmatpush1.xpose.msra.mxu0 0.0
        %1061 = vmatprep.subr.mxu0 0.0
        %1062 = vmatpush1.xpose.msra.mxu0 0.0
        %1063 = vmatprep.subr.mxu0 0.0
        %1064 = vmatpush1.xpose.msra.mxu0 0.0
        %1065 = vmatprep.subr.mxu0 0.0
        %1066 = vmatpush1.xpose.msra.mxu0 0.0
        %1067 = vmatprep.subr.mxu0 0.0
        %1068 = vmatpush1.xpose.msra.mxu0 0.0
        %1069 = vmatprep.subr.mxu0 0.0
        %1070 = vmatpush1.xpose.msra.mxu0 %v874
        %1071 = vmatprep.subr.mxu0 0.0
        %1072 = vmatpush2.xpose.msra.mxu0 0.0
        %1073 = vmatprep.subr.mxu0 0.0
        %1074 = vmatpush2.xpose.msra.mxu0 0.0
        %1075 = vmatprep.subr.mxu0 0.0
        %1076 = vmatpush2.xpose.msra.mxu0 0.0
        %1077 = vmatprep.subr.mxu0 0.0
        %1078 = vmatpush2.xpose.msra.mxu0 0.0
        %1079 = vmatprep.subr.mxu0 0.0
        %1080 = vmatpush2.xpose.msra.mxu0 0.0
        %1081 = vmatprep.subr.mxu0 0.0
        %1082 = vmatpush2.xpose.msra.mxu0 0.0
        %1083 = vmatprep.subr.mxu0 0.0
        %1084 = vmatpush2.xpose.msra.mxu0 0.0
        %1085 = vmatprep.subr.mxu0 0.0
        %1086 = vmatpush2.xpose.msra.mxu0 0.0
        %1087 = vmatprep.subr.mxu0 0.0
        %1088 = vmatpush2.xpose.msra.mxu0 0.0
        %1089 = vmatprep.subr.mxu0 0.0
        %1090 = vmatpush2.xpose.msra.mxu0 0.0
        %1091 = vmatprep.subr.mxu0 0.0
        %1092 = vmatpush2.xpose.msra.mxu0 0.0
        %1093 = vmatprep.subr.mxu0 0.0
        %1094 = vmatpush2.xpose.msra.mxu0 0.0
        %1095 = vmatprep.subr.mxu0 0.0
        %1096 = vmatpush2.xpose.msra.mxu0 0.0
        %1097 = vmatprep.subr.mxu0 0.0
        %1098 = vmatpush2.xpose.msra.mxu0 0.0
        %1099 = vmatprep.subr.mxu0 0.0
        %1100 = vmatpush2.xpose.msra.mxu0 0.0
        %1101 = vmatprep.subr.mxu0 0.0
        %1102 = vmatpush2.xpose.msra.mxu0 0.0
        %1103 = vmatprep.mubr.f32.mxu0 0.0
        %1104 = vmatmul.mubr.f32.gmra.mxu0 %v1037
        %v1105 = vpop.f32.mrf.mxu0
        %v1106 = vadd.f32 0.0, %v1105
        %v1107 = vpop.f32.mrf.mxu0
        %1108 = vdwg.mxu0
        %v1109 = vmul.f32 %v1106, 0.35355338
        %v1110 = vsel %vm547, %v1109, -inf
        %1111 = vmax.xlane.f32.xlu0 %v1110
        %v1112 = vpop.xlane.xlu0 %1111
        %v1113 = vsub.f32 %v1109, %v1112
        %v1114 = vmul.f32 %v1113, 1.442695
        %v1115 = vpow.pop %v1114
        %v1116 = vsel %vm547, %v1115, 0.0
        %1117 = vadd.xlane.f32.xlu0 %v1116
        %v1118 = vpop.xlane.xlu0 %1117
        %v1119 = vrcp.pop %v1118
        %v1120 = vmul.f32 %v1115, %v1119
        %v1122 = vsel %vm547, %v1120, 0
        %1124 = vmatprep.subr.mxu0 0.0
        %1125 = vmatpush1.msra.mxu0 0.0
        %1126 = vmatprep.subr.mxu0 0.0
        %1127 = vmatpush1.msra.mxu0 0.0
        %1128 = vmatprep.subr.mxu0 0.0
        %1129 = vmatpush1.msra.mxu0 0.0
        %1130 = vmatprep.subr.mxu0 0.0
        %1131 = vmatpush1.msra.mxu0 0.0
        %1132 = vmatprep.subr.mxu0 0.0
        %1133 = vmatpush1.msra.mxu0 0.0
        %1134 = vmatprep.subr.mxu0 0.0
        %1135 = vmatpush1.msra.mxu0 0.0
        %1136 = vmatprep.subr.mxu0 0.0
        %1137 = vmatpush1.msra.mxu0 0.0
        %1138 = vmatprep.subr.mxu0 0.0
        %1139 = vmatpush1.msra.mxu0 0.0
        %1140 = vmatprep.subr.mxu0 0.0
        %1141 = vmatpush1.msra.mxu0 0.0
        %1142 = vmatprep.subr.mxu0 0.0
        %1143 = vmatpush1.msra.mxu0 0.0
        %1144 = vmatprep.subr.mxu0 0.0
        %1145 = vmatpush1.msra.mxu0 0.0
        %1146 = vmatprep.subr.mxu0 0.0
        %1147 = vmatpush1.msra.mxu0 0.0
        %1148 = vmatprep.subr.mxu0 0.0
        %1149 = vmatpush1.msra.mxu0 0.0
        %1150 = vmatprep.subr.mxu0 0.0
        %1151 = vmatpush1.msra.mxu0 0.0
        %1152 = vmatprep.subr.mxu0 0.0
        %1153 = vmatpush1.msra.mxu0 0.0
        %1154 = vmatprep.subr.mxu0 0.0
        %1155 = vmatpush1.msra.mxu0 %v960
        %1156 = vmatprep.subr.mxu0 0.0
        %1157 = vmatpush2.msra.mxu0 0.0
        %1158 = vmatprep.subr.mxu0 0.0
        %1159 = vmatpush2.msra.mxu0 0.0
        %1160 = vmatprep.subr.mxu0 0.0
        %1161 = vmatpush2.msra.mxu0 0.0
        %1162 = vmatprep.subr.mxu0 0.0
        %1163 = vmatpush2.msra.mxu0 0.0
        %1164 = vmatprep.subr.mxu0 0.0
        %1165 = vmatpush2.msra.mxu0 0.0
        %1166 = vmatprep.subr.mxu0 0.0
        %1167 = vmatpush2.msra.mxu0 0.0
        %1168 = vmatprep.subr.mxu0 0.0
        %1169 = vmatpush2.msra.mxu0 0.0
        %1170 = vmatprep.subr.mxu0 0.0
        %1171 = vmatpush2.msra.mxu0 0.0
        %1172 = vmatprep.subr.mxu0 0.0
        %1173 = vmatpush2.msra.mxu0 0.0
        %1174 = vmatprep.subr.mxu0 0.0
        %1175 = vmatpush2.msra.mxu0 0.0
        %1176 = vmatprep.subr.mxu0 0.0
        %1177 = vmatpush2.msra.mxu0 0.0
        %1178 = vmatprep.subr.mxu0 0.0
        %1179 = vmatpush2.msra.mxu0 0.0
        %1180 = vmatprep.subr.mxu0 0.0
        %1181 = vmatpush2.msra.mxu0 0.0
        %1182 = vmatprep.subr.mxu0 0.0
        %1183 = vmatpush2.msra.mxu0 0.0
        %1184 = vmatprep.subr.mxu0 0.0
        %1185 = vmatpush2.msra.mxu0 0.0
        %1186 = vmatprep.subr.mxu0 0.0
        %1187 = vmatpush2.msra.mxu0 0.0
        %1188 = vmatprep.mubr.f32.mxu0 0.0
        %1189 = vmatmul.mubr.f32.gmra.mxu0 %v1122
        %v1190 = vpop.f32.mrf.mxu0
        %v1191 = vadd.f32 0.0, %v1190
        %v1192 = vpop.f32.mrf.mxu0
        %1193 = vdwg.mxu0
        %1194 = vrot.lane.b32.xlu0 %v396, 96
        %v1195 = vpop.permute.xlu0 %1194
        %1196 = vrot.lane.b32.xlu0 %v470, 112
        %v1197 = vpop.permute.xlu0 %1196
        %v1198 = vsel %vm547, %v1195, 0
        %v1200 = vsel %vm547, %v1197, 0
        %1202 = vmatprep.subr.mxu0 0.0
        %1203 = vmatpush1.xpose.msra.mxu0 0.0
        %1204 = vmatprep.subr.mxu0 0.0
        %1205 = vmatpush1.xpose.msra.mxu0 0.0
        %1206 = vmatprep.subr.mxu0 0.0
        %1207 = vmatpush1.xpose.msra.mxu0 0.0
        %1208 = vmatprep.subr.mxu0 0.0
        %1209 = vmatpush1.xpose.msra.mxu0 0.0
        %1210 = vmatprep.subr.mxu0 0.0
        %1211 = vmatpush1.xpose.msra.mxu0 0.0
        %1212 = vmatprep.subr.mxu0 0.0
        %1213 = vmatpush1.xpose.msra.mxu0 0.0
        %1214 = vmatprep.subr.mxu0 0.0
        %1215 = vmatpush1.xpose.msra.mxu0 0.0
        %1216 = vmatprep.subr.mxu0 0.0
        %1217 = vmatpush1.xpose.msra.mxu0 0.0
        %1218 = vmatprep.subr.mxu0 0.0
        %1219 = vmatpush1.xpose.msra.mxu0 0.0
        %1220 = vmatprep.subr.mxu0 0.0
        %1221 = vmatpush1.xpose.msra.mxu0 0.0
        %1222 = vmatprep.subr.mxu0 0.0
        %1223 = vmatpush1.xpose.msra.mxu0 0.0
        %1224 = vmatprep.subr.mxu0 0.0
        %1225 = vmatpush1.xpose.msra.mxu0 0.0
        %1226 = vmatprep.subr.mxu0 0.0
        %1227 = vmatpush1.xpose.msra.mxu0 0.0
        %1228 = vmatprep.subr.mxu0 0.0
        %1229 = vmatpush1.xpose.msra.mxu0 0.0
        %1230 = vmatprep.subr.mxu0 0.0
        %1231 = vmatpush1.xpose.msra.mxu0 0.0
        %1232 = vmatprep.subr.mxu0 0.0
        %1233 = vmatpush1.xpose.msra.mxu0 %v1200
        %1234 = vmatprep.subr.mxu0 0.0
        %1235 = vmatpush2.xpose.msra.mxu0 0.0
        %1236 = vmatprep.subr.mxu0 0.0
        %1237 = vmatpush2.xpose.msra.mxu0 0.0
        %1238 = vmatprep.subr.mxu0 0.0
        %1239 = vmatpush2.xpose.msra.mxu0 0.0
        %1240 = vmatprep.subr.mxu0 0.0
        %1241 = vmatpush2.xpose.msra.mxu0 0.0
        %1242 = vmatprep.subr.mxu0 0.0
        %1243 = vmatpush2.xpose.msra.mxu0 0.0
        %1244 = vmatprep.subr.mxu0 0.0
        %1245 = vmatpush2.xpose.msra.mxu0 0.0
        %1246 = vmatprep.subr.mxu0 0.0
        %1247 = vmatpush2.xpose.msra.mxu0 0.0
        %1248 = vmatprep.subr.mxu0 0.0
        %1249 = vmatpush2.xpose.msra.mxu0 0.0
        %1250 = vmatprep.subr.mxu0 0.0
        %1251 = vmatpush2.xpose.msra.mxu0 0.0
        %1252 = vmatprep.subr.mxu0 0.0
        %1253 = vmatpush2.xpose.msra.mxu0 0.0
        %1254 = vmatprep.subr.mxu0 0.0
        %1255 = vmatpush2.xpose.msra.mxu0 0.0
        %1256 = vmatprep.subr.mxu0 0.0
        %1257 = vmatpush2.xpose.msra.mxu0 0.0
        %1258 = vmatprep.subr.mxu0 0.0
        %1259 = vmatpush2.xpose.msra.mxu0 0.0
        %1260 = vmatprep.subr.mxu0 0.0
        %1261 = vmatpush2.xpose.msra.mxu0 0.0
        %1262 = vmatprep.subr.mxu0 0.0
        %1263 = vmatpush2.xpose.msra.mxu0 0.0
        %1264 = vmatprep.subr.mxu0 0.0
        %1265 = vmatpush2.xpose.msra.mxu0 0.0
        %1266 = vmatprep.mubr.f32.mxu0 0.0
        %1267 = vmatmul.mubr.f32.gmra.mxu0 %v1198
        %v1268 = vpop.f32.mrf.mxu0
        %v1269 = vadd.f32 0.0, %v1268
        %v1270 = vpop.f32.mrf.mxu0
        %1271 = vdwg.mxu0
        %v1272 = vmul.f32 %v1269, 0.35355338
        %v1273 = vsel %vm547, %v1272, -inf
        %1274 = vmax.xlane.f32.xlu0 %v1273
        %v1275 = vpop.xlane.xlu0 %1274
        %v1276 = vsub.f32 %v1272, %v1275
        %v1277 = vmul.f32 %v1276, 1.442695
        %v1278 = vpow.pop %v1277
        %v1279 = vsel %vm547, %v1278, 0.0
        %1280 = vadd.xlane.f32.xlu0 %v1279
        %v1281 = vpop.xlane.xlu0 %1280
        %v1282 = vrcp.pop %v1281
        %v1283 = vmul.f32 %v1278, %v1282
        %1284 = vrot.lane.b32.xlu0 %v544, 112
        %v1285 = vpop.permute.xlu0 %1284
        %v1288 = vsel %vm547, %v1283, 0
        %1290 = vmatprep.subr.mxu0 0.0
        %1291 = vmatpush1.msra.mxu0 0.0
        %1292 = vmatprep.subr.mxu0 0.0
        %1293 = vmatpush1.msra.mxu0 0.0
        %1294 = vmatprep.subr.mxu0 0.0
        %1295 = vmatpush1.msra.mxu0 0.0
        %1296 = vmatprep.subr.mxu0 0.0
        %1297 = vmatpush1.msra.mxu0 0.0
        %1298 = vmatprep.subr.mxu0 0.0
        %1299 = vmatpush1.msra.mxu0 0.0
        %1300 = vmatprep.subr.mxu0 0.0
        %1301 = vmatpush1.msra.mxu0 0.0
        %1302 = vmatprep.subr.mxu0 0.0
        %1303 = vmatpush1.msra.mxu0 0.0
        %1304 = vmatprep.subr.mxu0 0.0
        %1305 = vmatpush1.msra.mxu0 0.0
        %1306 = vmatprep.subr.mxu0 0.0
        %1307 = vmatpush1.msra.mxu0 0.0
        %1308 = vmatprep.subr.mxu0 0.0
        %1309 = vmatpush1.msra.mxu0 0.0
        %1310 = vmatprep.subr.mxu0 0.0
        %1311 = vmatpush1.msra.mxu0 0.0
        %1312 = vmatprep.subr.mxu0 0.0
        %1313 = vmatpush1.msra.mxu0 0.0
        %1314 = vmatprep.subr.mxu0 0.0
        %1315 = vmatpush1.msra.mxu0 0.0
        %1316 = vmatprep.subr.mxu0 0.0
        %1317 = vmatpush1.msra.mxu0 0.0
        %1318 = vmatprep.subr.mxu0 0.0
        %1319 = vmatpush1.msra.mxu0 0.0
        %1320 = vmatprep.subr.mxu0 0.0
        %1321 = vmatpush1.msra.mxu0 %v1285
        %1322 = vmatprep.subr.mxu0 0.0
        %1323 = vmatpush2.msra.mxu0 0.0
        %1324 = vmatprep.subr.mxu0 0.0
        %1325 = vmatpush2.msra.mxu0 0.0
        %1326 = vmatprep.subr.mxu0 0.0
        %1327 = vmatpush2.msra.mxu0 0.0
        %1328 = vmatprep.subr.mxu0 0.0
        %1329 = vmatpush2.msra.mxu0 0.0
        %1330 = vmatprep.subr.mxu0 0.0
        %1331 = vmatpush2.msra.mxu0 0.0
        %1332 = vmatprep.subr.mxu0 0.0
        %1333 = vmatpush2.msra.mxu0 0.0
        %1334 = vmatprep.subr.mxu0 0.0
        %1335 = vmatpush2.msra.mxu0 0.0
        %1336 = vmatprep.subr.mxu0 0.0
        %1337 = vmatpush2.msra.mxu0 0.0
        %1338 = vmatprep.subr.mxu0 0.0
        %1339 = vmatpush2.msra.mxu0 0.0
        %1340 = vmatprep.subr.mxu0 0.0
        %1341 = vmatpush2.msra.mxu0 0.0
        %1342 = vmatprep.subr.mxu0 0.0
        %1343 = vmatpush2.msra.mxu0 0.0
        %1344 = vmatprep.subr.mxu0 0.0
        %1345 = vmatpush2.msra.mxu0 0.0
        %1346 = vmatprep.subr.mxu0 0.0
        %1347 = vmatpush2.msra.mxu0 0.0
        %1348 = vmatprep.subr.mxu0 0.0
        %1349 = vmatpush2.msra.mxu0 0.0
        %1350 = vmatprep.subr.mxu0 0.0
        %1351 = vmatpush2.msra.mxu0 0.0
        %1352 = vmatprep.subr.mxu0 0.0
        %1353 = vmatpush2.msra.mxu0 0.0
        %1354 = vmatprep.mubr.f32.mxu0 0.0
        %1355 = vmatmul.mubr.f32.gmra.mxu0 %v1288
        %v1356 = vpop.f32.mrf.mxu0
        %v1357 = vadd.f32 0.0, %v1356
        %v1358 = vpop.f32.mrf.mxu0
        %1359 = vdwg.mxu0
        %1360 = vrot.lane.b32.xlu0 %v396, 88
        %v1361 = vpop.permute.xlu0 %1360
        %v1362 = vsel %vm547, %v1361, 0
        %1364 = vmatprep.subr.mxu0 0.0
        %1365 = vmatpush1.xpose.msra.mxu0 0.0
        %1366 = vmatprep.subr.mxu0 0.0
        %1367 = vmatpush1.xpose.msra.mxu0 0.0
        %1368 = vmatprep.subr.mxu0 0.0
        %1369 = vmatpush1.xpose.msra.mxu0 0.0
        %1370 = vmatprep.subr.mxu0 0.0
        %1371 = vmatpush1.xpose.msra.mxu0 0.0
        %1372 = vmatprep.subr.mxu0 0.0
        %1373 = vmatpush1.xpose.msra.mxu0 0.0
        %1374 = vmatprep.subr.mxu0 0.0
        %1375 = vmatpush1.xpose.msra.mxu0 0.0
        %1376 = vmatprep.subr.mxu0 0.0
        %1377 = vmatpush1.xpose.msra.mxu0 0.0
        %1378 = vmatprep.subr.mxu0 0.0
        %1379 = vmatpush1.xpose.msra.mxu0 0.0
        %1380 = vmatprep.subr.mxu0 0.0
        %1381 = vmatpush1.xpose.msra.mxu0 0.0
        %1382 = vmatprep.subr.mxu0 0.0
        %1383 = vmatpush1.xpose.msra.mxu0 0.0
        %1384 = vmatprep.subr.mxu0 0.0
        %1385 = vmatpush1.xpose.msra.mxu0 0.0
        %1386 = vmatprep.subr.mxu0 0.0
        %1387 = vmatpush1.xpose.msra.mxu0 0.0
        %1388 = vmatprep.subr.mxu0 0.0
        %1389 = vmatpush1.xpose.msra.mxu0 0.0
        %1390 = vmatprep.subr.mxu0 0.0
        %1391 = vmatpush1.xpose.msra.mxu0 0.0
        %1392 = vmatprep.subr.mxu0 0.0
        %1393 = vmatpush1.xpose.msra.mxu0 0.0
        %1394 = vmatprep.subr.mxu0 0.0
        %1395 = vmatpush1.xpose.msra.mxu0 %v1200
        %1396 = vmatprep.subr.mxu0 0.0
        %1397 = vmatpush2.xpose.msra.mxu0 0.0
        %1398 = vmatprep.subr.mxu0 0.0
        %1399 = vmatpush2.xpose.msra.mxu0 0.0
        %1400 = vmatprep.subr.mxu0 0.0
        %1401 = vmatpush2.xpose.msra.mxu0 0.0
        %1402 = vmatprep.subr.mxu0 0.0
        %1403 = vmatpush2.xpose.msra.mxu0 0.0
        %1404 = vmatprep.subr.mxu0 0.0
        %1405 = vmatpush2.xpose.msra.mxu0 0.0
        %1406 = vmatprep.subr.mxu0 0.0
        %1407 = vmatpush2.xpose.msra.mxu0 0.0
        %1408 = vmatprep.subr.mxu0 0.0
        %1409 = vmatpush2.xpose.msra.mxu0 0.0
        %1410 = vmatprep.subr.mxu0 0.0
        %1411 = vmatpush2.xpose.msra.mxu0 0.0
        %1412 = vmatprep.subr.mxu0 0.0
        %1413 = vmatpush2.xpose.msra.mxu0 0.0
        %1414 = vmatprep.subr.mxu0 0.0
        %1415 = vmatpush2.xpose.msra.mxu0 0.0
        %1416 = vmatprep.subr.mxu0 0.0
        %1417 = vmatpush2.xpose.msra.mxu0 0.0
        %1418 = vmatprep.subr.mxu0 0.0
        %1419 = vmatpush2.xpose.msra.mxu0 0.0
        %1420 = vmatprep.subr.mxu0 0.0
        %1421 = vmatpush2.xpose.msra.mxu0 0.0
        %1422 = vmatprep.subr.mxu0 0.0
        %1423 = vmatpush2.xpose.msra.mxu0 0.0
        %1424 = vmatprep.subr.mxu0 0.0
        %1425 = vmatpush2.xpose.msra.mxu0 0.0
        %1426 = vmatprep.subr.mxu0 0.0
        %1427 = vmatpush2.xpose.msra.mxu0 0.0
        %1428 = vmatprep.mubr.f32.mxu0 0.0
        %1429 = vmatmul.mubr.f32.gmra.mxu0 %v1362
        %v1430 = vpop.f32.mrf.mxu0
        %v1431 = vadd.f32 0.0, %v1430
        %v1432 = vpop.f32.mrf.mxu0
        %1433 = vdwg.mxu0
        %v1434 = vmul.f32 %v1431, 0.35355338
        %v1435 = vsel %vm547, %v1434, -inf
        %1436 = vmax.xlane.f32.xlu0 %v1435
        %v1437 = vpop.xlane.xlu0 %1436
        %v1438 = vsub.f32 %v1434, %v1437
        %v1439 = vmul.f32 %v1438, 1.442695
        %v1440 = vpow.pop %v1439
        %v1441 = vsel %vm547, %v1440, 0.0
        %1442 = vadd.xlane.f32.xlu0 %v1441
        %v1443 = vpop.xlane.xlu0 %1442
        %v1444 = vrcp.pop %v1443
        %v1445 = vmul.f32 %v1440, %v1444
        %v1447 = vsel %vm547, %v1445, 0
        %1449 = vmatprep.subr.mxu0 0.0
        %1450 = vmatpush1.msra.mxu0 0.0
        %1451 = vmatprep.subr.mxu0 0.0
        %1452 = vmatpush1.msra.mxu0 0.0
        %1453 = vmatprep.subr.mxu0 0.0
        %1454 = vmatpush1.msra.mxu0 0.0
        %1455 = vmatprep.subr.mxu0 0.0
        %1456 = vmatpush1.msra.mxu0 0.0
        %1457 = vmatprep.subr.mxu0 0.0
        %1458 = vmatpush1.msra.mxu0 0.0
        %1459 = vmatprep.subr.mxu0 0.0
        %1460 = vmatpush1.msra.mxu0 0.0
        %1461 = vmatprep.subr.mxu0 0.0
        %1462 = vmatpush1.msra.mxu0 0.0
        %1463 = vmatprep.subr.mxu0 0.0
        %1464 = vmatpush1.msra.mxu0 0.0
        %1465 = vmatprep.subr.mxu0 0.0
        %1466 = vmatpush1.msra.mxu0 0.0
        %1467 = vmatprep.subr.mxu0 0.0
        %1468 = vmatpush1.msra.mxu0 0.0
        %1469 = vmatprep.subr.mxu0 0.0
        %1470 = vmatpush1.msra.mxu0 0.0
        %1471 = vmatprep.subr.mxu0 0.0
        %1472 = vmatpush1.msra.mxu0 0.0
        %1473 = vmatprep.subr.mxu0 0.0
        %1474 = vmatpush1.msra.mxu0 0.0
        %1475 = vmatprep.subr.mxu0 0.0
        %1476 = vmatpush1.msra.mxu0 0.0
        %1477 = vmatprep.subr.mxu0 0.0
        %1478 = vmatpush1.msra.mxu0 0.0
        %1479 = vmatprep.subr.mxu0 0.0
        %1480 = vmatpush1.msra.mxu0 %v1285
        %1481 = vmatprep.subr.mxu0 0.0
        %1482 = vmatpush2.msra.mxu0 0.0
        %1483 = vmatprep.subr.mxu0 0.0
        %1484 = vmatpush2.msra.mxu0 0.0
        %1485 = vmatprep.subr.mxu0 0.0
        %1486 = vmatpush2.msra.mxu0 0.0
        %1487 = vmatprep.subr.mxu0 0.0
        %1488 = vmatpush2.msra.mxu0 0.0
        %1489 = vmatprep.subr.mxu0 0.0
        %1490 = vmatpush2.msra.mxu0 0.0
        %1491 = vmatprep.subr.mxu0 0.0
        %1492 = vmatpush2.msra.mxu0 0.0
        %1493 = vmatprep.subr.mxu0 0.0
        %1494 = vmatpush2.msra.mxu0 0.0
        %1495 = vmatprep.subr.mxu0 0.0
        %1496 = vmatpush2.msra.mxu0 0.0
        %1497 = vmatprep.subr.mxu0 0.0
        %1498 = vmatpush2.msra.mxu0 0.0
        %1499 = vmatprep.subr.mxu0 0.0
        %1500 = vmatpush2.msra.mxu0 0.0
        %1501 = vmatprep.subr.mxu0 0.0
        %1502 = vmatpush2.msra.mxu0 0.0
        %1503 = vmatprep.subr.mxu0 0.0
        %1504 = vmatpush2.msra.mxu0 0.0
        %1505 = vmatprep.subr.mxu0 0.0
        %1506 = vmatpush2.msra.mxu0 0.0
        %1507 = vmatprep.subr.mxu0 0.0
        %1508 = vmatpush2.msra.mxu0 0.0
        %1509 = vmatprep.subr.mxu0 0.0
        %1510 = vmatpush2.msra.mxu0 0.0
        %1511 = vmatprep.subr.mxu0 0.0
        %1512 = vmatpush2.msra.mxu0 0.0
        %1513 = vmatprep.mubr.f32.mxu0 0.0
        %1514 = vmatmul.mubr.f32.gmra.mxu0 %v1447
        %v1515 = vpop.f32.mrf.mxu0
        %v1516 = vadd.f32 0.0, %v1515
        %v1517 = vpop.f32.mrf.mxu0
        %1518 = vdwg.mxu0
        %1519 = vrot.lane.b32.xlu0 %v396, 80
        %v1520 = vpop.permute.xlu0 %1519
        %1521 = vrot.lane.b32.xlu0 %v470, 104
        %v1522 = vpop.permute.xlu0 %1521
        %v1523 = vsel %vm547, %v1520, 0
        %v1525 = vsel %vm547, %v1522, 0
        %1527 = vmatprep.subr.mxu0 0.0
        %1528 = vmatpush1.xpose.msra.mxu0 0.0
        %1529 = vmatprep.subr.mxu0 0.0
        %1530 = vmatpush1.xpose.msra.mxu0 0.0
        %1531 = vmatprep.subr.mxu0 0.0
        %1532 = vmatpush1.xpose.msra.mxu0 0.0
        %1533 = vmatprep.subr.mxu0 0.0
        %1534 = vmatpush1.xpose.msra.mxu0 0.0
        %1535 = vmatprep.subr.mxu0 0.0
        %1536 = vmatpush1.xpose.msra.mxu0 0.0
        %1537 = vmatprep.subr.mxu0 0.0
        %1538 = vmatpush1.xpose.msra.mxu0 0.0
        %1539 = vmatprep.subr.mxu0 0.0
        %1540 = vmatpush1.xpose.msra.mxu0 0.0
        %1541 = vmatprep.subr.mxu0 0.0
        %1542 = vmatpush1.xpose.msra.mxu0 0.0
        %1543 = vmatprep.subr.mxu0 0.0
        %1544 = vmatpush1.xpose.msra.mxu0 0.0
        %1545 = vmatprep.subr.mxu0 0.0
        %1546 = vmatpush1.xpose.msra.mxu0 0.0
        %1547 = vmatprep.subr.mxu0 0.0
        %1548 = vmatpush1.xpose.msra.mxu0 0.0
        %1549 = vmatprep.subr.mxu0 0.0
        %1550 = vmatpush1.xpose.msra.mxu0 0.0
        %1551 = vmatprep.subr.mxu0 0.0
        %1552 = vmatpush1.xpose.msra.mxu0 0.0
        %1553 = vmatprep.subr.mxu0 0.0
        %1554 = vmatpush1.xpose.msra.mxu0 0.0
        %1555 = vmatprep.subr.mxu0 0.0
        %1556 = vmatpush1.xpose.msra.mxu0 0.0
        %1557 = vmatprep.subr.mxu0 0.0
        %1558 = vmatpush1.xpose.msra.mxu0 %v1525
        %1559 = vmatprep.subr.mxu0 0.0
        %1560 = vmatpush2.xpose.msra.mxu0 0.0
        %1561 = vmatprep.subr.mxu0 0.0
        %1562 = vmatpush2.xpose.msra.mxu0 0.0
        %1563 = vmatprep.subr.mxu0 0.0
        %1564 = vmatpush2.xpose.msra.mxu0 0.0
        %1565 = vmatprep.subr.mxu0 0.0
        %1566 = vmatpush2.xpose.msra.mxu0 0.0
        %1567 = vmatprep.subr.mxu0 0.0
        %1568 = vmatpush2.xpose.msra.mxu0 0.0
        %1569 = vmatprep.subr.mxu0 0.0
        %1570 = vmatpush2.xpose.msra.mxu0 0.0
        %1571 = vmatprep.subr.mxu0 0.0
        %1572 = vmatpush2.xpose.msra.mxu0 0.0
        %1573 = vmatprep.subr.mxu0 0.0
        %1574 = vmatpush2.xpose.msra.mxu0 0.0
        %1575 = vmatprep.subr.mxu0 0.0
        %1576 = vmatpush2.xpose.msra.mxu0 0.0
        %1577 = vmatprep.subr.mxu0 0.0
        %1578 = vmatpush2.xpose.msra.mxu0 0.0
        %1579 = vmatprep.subr.mxu0 0.0
        %1580 = vmatpush2.xpose.msra.mxu0 0.0
        %1581 = vmatprep.subr.mxu0 0.0
        %1582 = vmatpush2.xpose.msra.mxu0 0.0
        %1583 = vmatprep.subr.mxu0 0.0
        %1584 = vmatpush2.xpose.msra.mxu0 0.0
        %1585 = vmatprep.subr.mxu0 0.0
        %1586 = vmatpush2.xpose.msra.mxu0 0.0
        %1587 = vmatprep.subr.mxu0 0.0
        %1588 = vmatpush2.xpose.msra.mxu0 0.0
        %1589 = vmatprep.subr.mxu0 0.0
        %1590 = vmatpush2.xpose.msra.mxu0 0.0
        %1591 = vmatprep.mubr.f32.mxu0 0.0
        %1592 = vmatmul.mubr.f32.gmra.mxu0 %v1523
        %v1593 = vpop.f32.mrf.mxu0
        %v1594 = vadd.f32 0.0, %v1593
        %v1595 = vpop.f32.mrf.mxu0
        %1596 = vdwg.mxu0
        %v1597 = vmul.f32 %v1594, 0.35355338
        %v1598 = vsel %vm547, %v1597, -inf
        %1599 = vmax.xlane.f32.xlu0 %v1598
        %v1600 = vpop.xlane.xlu0 %1599
        %v1601 = vsub.f32 %v1597, %v1600
        %v1602 = vmul.f32 %v1601, 1.442695
        %v1603 = vpow.pop %v1602
        %v1604 = vsel %vm547, %v1603, 0.0
        %1605 = vadd.xlane.f32.xlu0 %v1604
        %v1606 = vpop.xlane.xlu0 %1605
        %v1607 = vrcp.pop %v1606
        %v1608 = vmul.f32 %v1603, %v1607
        %1609 = vrot.lane.b32.xlu0 %v544, 104
        %v1610 = vpop.permute.xlu0 %1609
        %v1613 = vsel %vm547, %v1608, 0
        %1615 = vmatprep.subr.mxu0 0.0
        %1616 = vmatpush1.msra.mxu0 0.0
        %1617 = vmatprep.subr.mxu0 0.0
        %1618 = vmatpush1.msra.mxu0 0.0
        %1619 = vmatprep.subr.mxu0 0.0
        %1620 = vmatpush1.msra.mxu0 0.0
        %1621 = vmatprep.subr.mxu0 0.0
        %1622 = vmatpush1.msra.mxu0 0.0
        %1623 = vmatprep.subr.mxu0 0.0
        %1624 = vmatpush1.msra.mxu0 0.0
        %1625 = vmatprep.subr.mxu0 0.0
        %1626 = vmatpush1.msra.mxu0 0.0
        %1627 = vmatprep.subr.mxu0 0.0
        %1628 = vmatpush1.msra.mxu0 0.0
        %1629 = vmatprep.subr.mxu0 0.0
        %1630 = vmatpush1.msra.mxu0 0.0
        %1631 = vmatprep.subr.mxu0 0.0
        %1632 = vmatpush1.msra.mxu0 0.0
        %1633 = vmatprep.subr.mxu0 0.0
        %1634 = vmatpush1.msra.mxu0 0.0
        %1635 = vmatprep.subr.mxu0 0.0
        %1636 = vmatpush1.msra.mxu0 0.0
        %1637 = vmatprep.subr.mxu0 0.0
        %1638 = vmatpush1.msra.mxu0 0.0
        %1639 = vmatprep.subr.mxu0 0.0
        %1640 = vmatpush1.msra.mxu0 0.0
        %1641 = vmatprep.subr.mxu0 0.0
        %1642 = vmatpush1.msra.mxu0 0.0
        %1643 = vmatprep.subr.mxu0 0.0
        %1644 = vmatpush1.msra.mxu0 0.0
        %1645 = vmatprep.subr.mxu0 0.0
        %1646 = vmatpush1.msra.mxu0 %v1610
        %1647 = vmatprep.subr.mxu0 0.0
        %1648 = vmatpush2.msra.mxu0 0.0
        %1649 = vmatprep.subr.mxu0 0.0
        %1650 = vmatpush2.msra.mxu0 0.0
        %1651 = vmatprep.subr.mxu0 0.0
        %1652 = vmatpush2.msra.mxu0 0.0
        %1653 = vmatprep.subr.mxu0 0.0
        %1654 = vmatpush2.msra.mxu0 0.0
        %1655 = vmatprep.subr.mxu0 0.0
        %1656 = vmatpush2.msra.mxu0 0.0
        %1657 = vmatprep.subr.mxu0 0.0
        %1658 = vmatpush2.msra.mxu0 0.0
        %1659 = vmatprep.subr.mxu0 0.0
        %1660 = vmatpush2.msra.mxu0 0.0
        %1661 = vmatprep.subr.mxu0 0.0
        %1662 = vmatpush2.msra.mxu0 0.0
        %1663 = vmatprep.subr.mxu0 0.0
        %1664 = vmatpush2.msra.mxu0 0.0
        %1665 = vmatprep.subr.mxu0 0.0
        %1666 = vmatpush2.msra.mxu0 0.0
        %1667 = vmatprep.subr.mxu0 0.0
        %1668 = vmatpush2.msra.mxu0 0.0
        %1669 = vmatprep.subr.mxu0 0.0
        %1670 = vmatpush2.msra.mxu0 0.0
        %1671 = vmatprep.subr.mxu0 0.0
        %1672 = vmatpush2.msra.mxu0 0.0
        %1673 = vmatprep.subr.mxu0 0.0
        %1674 = vmatpush2.msra.mxu0 0.0
        %1675 = vmatprep.subr.mxu0 0.0
        %1676 = vmatpush2.msra.mxu0 0.0
        %1677 = vmatprep.subr.mxu0 0.0
        %1678 = vmatpush2.msra.mxu0 0.0
        %1679 = vmatprep.mubr.f32.mxu0 0.0
        %1680 = vmatmul.mubr.f32.gmra.mxu0 %v1613
        %v1681 = vpop.f32.mrf.mxu0
        %v1682 = vadd.f32 0.0, %v1681
        %v1683 = vpop.f32.mrf.mxu0
        %1684 = vdwg.mxu0
        %1685 = vrot.lane.b32.xlu0 %v396, 72
        %v1686 = vpop.permute.xlu0 %1685
        %v1687 = vsel %vm547, %v1686, 0
        %1689 = vmatprep.subr.mxu0 0.0
        %1690 = vmatpush1.xpose.msra.mxu0 0.0
        %1691 = vmatprep.subr.mxu0 0.0
        %1692 = vmatpush1.xpose.msra.mxu0 0.0
        %1693 = vmatprep.subr.mxu0 0.0
        %1694 = vmatpush1.xpose.msra.mxu0 0.0
        %1695 = vmatprep.subr.mxu0 0.0
        %1696 = vmatpush1.xpose.msra.mxu0 0.0
        %1697 = vmatprep.subr.mxu0 0.0
        %1698 = vmatpush1.xpose.msra.mxu0 0.0
        %1699 = vmatprep.subr.mxu0 0.0
        %1700 = vmatpush1.xpose.msra.mxu0 0.0
        %1701 = vmatprep.subr.mxu0 0.0
        %1702 = vmatpush1.xpose.msra.mxu0 0.0
        %1703 = vmatprep.subr.mxu0 0.0
        %1704 = vmatpush1.xpose.msra.mxu0 0.0
        %1705 = vmatprep.subr.mxu0 0.0
        %1706 = vmatpush1.xpose.msra.mxu0 0.0
        %1707 = vmatprep.subr.mxu0 0.0
        %1708 = vmatpush1.xpose.msra.mxu0 0.0
        %1709 = vmatprep.subr.mxu0 0.0
        %1710 = vmatpush1.xpose.msra.mxu0 0.0
        %1711 = vmatprep.subr.mxu0 0.0
        %1712 = vmatpush1.xpose.msra.mxu0 0.0
        %1713 = vmatprep.subr.mxu0 0.0
        %1714 = vmatpush1.xpose.msra.mxu0 0.0
        %1715 = vmatprep.subr.mxu0 0.0
        %1716 = vmatpush1.xpose.msra.mxu0 0.0
        %1717 = vmatprep.subr.mxu0 0.0
        %1718 = vmatpush1.xpose.msra.mxu0 0.0
        %1719 = vmatprep.subr.mxu0 0.0
        %1720 = vmatpush1.xpose.msra.mxu0 %v1525
        %1721 = vmatprep.subr.mxu0 0.0
        %1722 = vmatpush2.xpose.msra.mxu0 0.0
        %1723 = vmatprep.subr.mxu0 0.0
        %1724 = vmatpush2.xpose.msra.mxu0 0.0
        %1725 = vmatprep.subr.mxu0 0.0
        %1726 = vmatpush2.xpose.msra.mxu0 0.0
        %1727 = vmatprep.subr.mxu0 0.0
        %1728 = vmatpush2.xpose.msra.mxu0 0.0
        %1729 = vmatprep.subr.mxu0 0.0
        %1730 = vmatpush2.xpose.msra.mxu0 0.0
        %1731 = vmatprep.subr.mxu0 0.0
        %1732 = vmatpush2.xpose.msra.mxu0 0.0
        %1733 = vmatprep.subr.mxu0 0.0
        %1734 = vmatpush2.xpose.msra.mxu0 0.0
        %1735 = vmatprep.subr.mxu0 0.0
        %1736 = vmatpush2.xpose.msra.mxu0 0.0
        %1737 = vmatprep.subr.mxu0 0.0
        %1738 = vmatpush2.xpose.msra.mxu0 0.0
        %1739 = vmatprep.subr.mxu0 0.0
        %1740 = vmatpush2.xpose.msra.mxu0 0.0
        %1741 = vmatprep.subr.mxu0 0.0
        %1742 = vmatpush2.xpose.msra.mxu0 0.0
        %1743 = vmatprep.subr.mxu0 0.0
        %1744 = vmatpush2.xpose.msra.mxu0 0.0
        %1745 = vmatprep.subr.mxu0 0.0
        %1746 = vmatpush2.xpose.msra.mxu0 0.0
        %1747 = vmatprep.subr.mxu0 0.0
        %1748 = vmatpush2.xpose.msra.mxu0 0.0
        %1749 = vmatprep.subr.mxu0 0.0
        %1750 = vmatpush2.xpose.msra.mxu0 0.0
        %1751 = vmatprep.subr.mxu0 0.0
        %1752 = vmatpush2.xpose.msra.mxu0 0.0
        %1753 = vmatprep.mubr.f32.mxu0 0.0
        %1754 = vmatmul.mubr.f32.gmra.mxu0 %v1687
        %v1755 = vpop.f32.mrf.mxu0
        %v1756 = vadd.f32 0.0, %v1755
        %v1757 = vpop.f32.mrf.mxu0
        %1758 = vdwg.mxu0
        %v1759 = vmul.f32 %v1756, 0.35355338
        %v1760 = vsel %vm547, %v1759, -inf
        %1761 = vmax.xlane.f32.xlu0 %v1760
        %v1762 = vpop.xlane.xlu0 %1761
        %v1763 = vsub.f32 %v1759, %v1762
        %v1764 = vmul.f32 %v1763, 1.442695
        %v1765 = vpow.pop %v1764
        %v1766 = vsel %vm547, %v1765, 0.0
        %1767 = vadd.xlane.f32.xlu0 %v1766
        %v1768 = vpop.xlane.xlu0 %1767
        %v1769 = vrcp.pop %v1768
        %v1770 = vmul.f32 %v1765, %v1769
        %v1772 = vsel %vm547, %v1770, 0
        %1774 = vmatprep.subr.mxu0 0.0
        %1775 = vmatpush1.msra.mxu0 0.0
        %1776 = vmatprep.subr.mxu0 0.0
        %1777 = vmatpush1.msra.mxu0 0.0
        %1778 = vmatprep.subr.mxu0 0.0
        %1779 = vmatpush1.msra.mxu0 0.0
        %1780 = vmatprep.subr.mxu0 0.0
        %1781 = vmatpush1.msra.mxu0 0.0
        %1782 = vmatprep.subr.mxu0 0.0
        %1783 = vmatpush1.msra.mxu0 0.0
        %1784 = vmatprep.subr.mxu0 0.0
        %1785 = vmatpush1.msra.mxu0 0.0
        %1786 = vmatprep.subr.mxu0 0.0
        %1787 = vmatpush1.msra.mxu0 0.0
        %1788 = vmatprep.subr.mxu0 0.0
        %1789 = vmatpush1.msra.mxu0 0.0
        %1790 = vmatprep.subr.mxu0 0.0
        %1791 = vmatpush1.msra.mxu0 0.0
        %1792 = vmatprep.subr.mxu0 0.0
        %1793 = vmatpush1.msra.mxu0 0.0
        %1794 = vmatprep.subr.mxu0 0.0
        %1795 = vmatpush1.msra.mxu0 0.0
        %1796 = vmatprep.subr.mxu0 0.0
        %1797 = vmatpush1.msra.mxu0 0.0
        %1798 = vmatprep.subr.mxu0 0.0
        %1799 = vmatpush1.msra.mxu0 0.0
        %1800 = vmatprep.subr.mxu0 0.0
        %1801 = vmatpush1.msra.mxu0 0.0
        %1802 = vmatprep.subr.mxu0 0.0
        %1803 = vmatpush1.msra.mxu0 0.0
        %1804 = vmatprep.subr.mxu0 0.0
        %1805 = vmatpush1.msra.mxu0 %v1610
        %1806 = vmatprep.subr.mxu0 0.0
        %1807 = vmatpush2.msra.mxu0 0.0
        %1808 = vmatprep.subr.mxu0 0.0
        %1809 = vmatpush2.msra.mxu0 0.0
        %1810 = vmatprep.subr.mxu0 0.0
        %1811 = vmatpush2.msra.mxu0 0.0
        %1812 = vmatprep.subr.mxu0 0.0
        %1813 = vmatpush2.msra.mxu0 0.0
        %1814 = vmatprep.subr.mxu0 0.0
        %1815 = vmatpush2.msra.mxu0 0.0
        %1816 = vmatprep.subr.mxu0 0.0
        %1817 = vmatpush2.msra.mxu0 0.0
        %1818 = vmatprep.subr.mxu0 0.0
        %1819 = vmatpush2.msra.mxu0 0.0
        %1820 = vmatprep.subr.mxu0 0.0
        %1821 = vmatpush2.msra.mxu0 0.0
        %1822 = vmatprep.subr.mxu0 0.0
        %1823 = vmatpush2.msra.mxu0 0.0
        %1824 = vmatprep.subr.mxu0 0.0
        %1825 = vmatpush2.msra.mxu0 0.0
        %1826 = vmatprep.subr.mxu0 0.0
        %1827 = vmatpush2.msra.mxu0 0.0
        %1828 = vmatprep.subr.mxu0 0.0
        %1829 = vmatpush2.msra.mxu0 0.0
        %1830 = vmatprep.subr.mxu0 0.0
        %1831 = vmatpush2.msra.mxu0 0.0
        %1832 = vmatprep.subr.mxu0 0.0
        %1833 = vmatpush2.msra.mxu0 0.0
        %1834 = vmatprep.subr.mxu0 0.0
        %1835 = vmatpush2.msra.mxu0 0.0
        %1836 = vmatprep.subr.mxu0 0.0
        %1837 = vmatpush2.msra.mxu0 0.0
        %1838 = vmatprep.mubr.f32.mxu0 0.0
        %1839 = vmatmul.mubr.f32.gmra.mxu0 %v1772
        %v1840 = vpop.f32.mrf.mxu0
        %v1841 = vadd.f32 0.0, %v1840
        %v1842 = vpop.f32.mrf.mxu0
        %1843 = vdwg.mxu0
        %1845 = vrot.lane.b32.xlu0 %v865, 8
        %v1846 = vpop.permute.xlu0 %1845
        %1849 = vrot.lane.b32.xlu0 %v1032, 16
        %v1850 = vpop.permute.xlu0 %1849
        %1853 = vrot.lane.b32.xlu0 %v1191, 24
        %v1854 = vpop.permute.xlu0 %1853
        %1857 = vrot.lane.b32.xlu0 %v1357, 32
        %v1858 = vpop.permute.xlu0 %1857
        %1861 = vrot.lane.b32.xlu0 %v1516, 40
        %v1862 = vpop.permute.xlu0 %1861
        %1865 = vrot.lane.b32.xlu0 %v1682, 48
        %v1866 = vpop.permute.xlu0 %1865
        %1869 = vrot.lane.b32.xlu0 %v1841, 56
        %v1870 = vpop.permute.xlu0 %1869
        %v1872 = vsel %vm547, %v706, %v1846
        %vm1873 = vcmask 130048
        %v1874 = vsel %vm1873, %v1872, %v1850
        %vm1875 = vcmask 195584
        %v1876 = vsel %vm1875, %v1874, %v1854
        %v1877 = vsel %vm325, %v1876, %v1858
        %vm1878 = vcmask 326656
        %v1879 = vsel %vm1878, %v1877, %v1862
        %vm1880 = vcmask 392192
        %v1881 = vsel %vm1880, %v1879, %v1866
        %vm1882 = vcmask 457728
        %v1883 = vsel %vm1882, %v1881, %v1870
        %v1884 = vld [vmem:[%s4] sm:$0xff]
        %v1885 = vld [vmem:[%s4 + $0x8] sm:$0xff]
        %v1886 = vld [vmem:[%s4 + $0x10] sm:$0xff]
        %v1887 = vld [vmem:[%s4 + $0x18] sm:$0xff]
        %v1888 = vld [vmem:[%s4 + $0x20] sm:$0xff]
        %v1889 = vld [vmem:[%s4 + $0x28] sm:$0xff]
        %v1890 = vld [vmem:[%s4 + $0x30] sm:$0xff]
        %v1891 = vld [vmem:[%s4 + $0x38] sm:$0xff]
        %vm1892 = vcmask 523264
        %v1894 = vsel %vm1892, %v1883, 0
        %1896 = vmatprep.subr.mxu0 0.0
        %1897 = vmatpush1.msra.mxu0 0.0
        %1898 = vmatprep.subr.mxu0 0.0
        %1899 = vmatpush1.msra.mxu0 0.0
        %1900 = vmatprep.subr.mxu0 0.0
        %1901 = vmatpush1.msra.mxu0 0.0
        %1902 = vmatprep.subr.mxu0 0.0
        %1903 = vmatpush1.msra.mxu0 0.0
        %1904 = vmatprep.subr.mxu0 0.0
        %1905 = vmatpush1.msra.mxu0 0.0
        %1906 = vmatprep.subr.mxu0 0.0
        %1907 = vmatpush1.msra.mxu0 0.0
        %1908 = vmatprep.subr.mxu0 0.0
        %1909 = vmatpush1.msra.mxu0 0.0
        %1910 = vmatprep.subr.mxu0 0.0
        %1911 = vmatpush1.msra.mxu0 0.0
        %1912 = vmatprep.subr.mxu0 0.0
        %1913 = vmatpush1.msra.mxu0 %v1891
        %1914 = vmatprep.subr.mxu0 0.0
        %1915 = vmatpush1.msra.mxu0 %v1890
        %1916 = vmatprep.subr.mxu0 0.0
        %1917 = vmatpush1.msra.mxu0 %v1889
        %1918 = vmatprep.subr.mxu0 0.0
        %1919 = vmatpush1.msra.mxu0 %v1888
        %1920 = vmatprep.subr.mxu0 0.0
        %1921 = vmatpush1.msra.mxu0 %v1887
        %1922 = vmatprep.subr.mxu0 0.0
        %1923 = vmatpush1.msra.mxu0 %v1886
        %1924 = vmatprep.subr.mxu0 0.0
        %1925 = vmatpush1.msra.mxu0 %v1885
        %1926 = vmatprep.subr.mxu0 0.0
        %1927 = vmatpush1.msra.mxu0 %v1884
        %1928 = vmatprep.subr.mxu0 0.0
        %1929 = vmatpush2.msra.mxu0 0.0
        %1930 = vmatprep.subr.mxu0 0.0
        %1931 = vmatpush2.msra.mxu0 0.0
        %1932 = vmatprep.subr.mxu0 0.0
        %1933 = vmatpush2.msra.mxu0 0.0
        %1934 = vmatprep.subr.mxu0 0.0
        %1935 = vmatpush2.msra.mxu0 0.0
        %1936 = vmatprep.subr.mxu0 0.0
        %1937 = vmatpush2.msra.mxu0 0.0
        %1938 = vmatprep.subr.mxu0 0.0
        %1939 = vmatpush2.msra.mxu0 0.0
        %1940 = vmatprep.subr.mxu0 0.0
        %1941 = vmatpush2.msra.mxu0 0.0
        %1942 = vmatprep.subr.mxu0 0.0
        %1943 = vmatpush2.msra.mxu0 0.0
        %1944 = vmatprep.subr.mxu0 0.0
        %1945 = vmatpush2.msra.mxu0 0.0
        %1946 = vmatprep.subr.mxu0 0.0
        %1947 = vmatpush2.msra.mxu0 0.0
        %1948 = vmatprep.subr.mxu0 0.0
        %1949 = vmatpush2.msra.mxu0 0.0
        %1950 = vmatprep.subr.mxu0 0.0
        %1951 = vmatpush2.msra.mxu0 0.0
        %1952 = vmatprep.subr.mxu0 0.0
        %1953 = vmatpush2.msra.mxu0 0.0
        %1954 = vmatprep.subr.mxu0 0.0
        %1955 = vmatpush2.msra.mxu0 0.0
        %1956 = vmatprep.subr.mxu0 0.0
        %1957 = vmatpush2.msra.mxu0 0.0
        %1958 = vmatprep.subr.mxu0 0.0
        %1959 = vmatpush2.msra.mxu0 0.0
        %1960 = vmatprep.mubr.f32.mxu0 0.0
        %1961 = vmatmul.mubr.f32.gmra.mxu0 %v1894
        %v1962 = vpop.f32.mrf.mxu0
        %v1963 = vadd.f32 0.0, %v1962
        %v1964 = vpop.f32.mrf.mxu0
        %1965 = vdwg.mxu0
        %v1966 = vxor.u32 %v1963, 2147483648
        %v1967 = vmul.f32 %v1966, 1.442695
        %v1968 = vpow.pop %v1967
        %v1969 = vadd.f32 %v1968, 1.0
        %v1970 = vrcp.pop %v1969
        %v1971 = vmul.f32 1.0, %v1970
        %vm1972 = vcmask 7168
        %v1973 = vsel %vm1972, %v1971, 0.0
        %v1974 = vrot.slane %v1973, 4
        %v1975 = vadd.f32 %v1973, %v1974
        %v1976 = vrot.slane %v1975, 2
        %v1977 = vadd.f32 %v1975, %v1976
        %v1978 = vrot.slane %v1977, 1
        %v1979 = vadd.f32 %v1977, %v1978
        %v1980 = vrcp.pop 8.0
        %v1981 = vmul.f32 %v1979, %v1980
        %v1982 = vld [vmem:[#allocation2] sm:$0x1]
        %v1983 = vmul.f32 %v1981, %v1982
        %v1984 = vmul.f32 %v1983, 510.0
        %v1985 = vadd.f32 %v1984, 2.0
        %v1986 = vcvt.f32.s32.to.zero.pseudo %v1985
        %vm1987 = vcmask 0
        %1988 = vst.msk [vmem:[%s315] sm:$0x1] %vm1987, %v1986
        %1990 = vrot.lane.b32.xlu0 %v1971, 127
        %v1991 = vpop.permute.xlu0 %1990
        %1993 = vst.msk [vmem:[%s319] sm:$0xff] %vm1972, %v1991
        %p1994 = scmp.lt.s32.totalorder %s25, 1
        %s1995 = scalar_select %p1994, %s25, 1
        %s1996 = scalar_lea.vmem %s6, %s1995
        %p1997 = scmp.lt.s32.totalorder %s25, 1
        %s1998 = scalar_select %p1997, %s25, 1
        %s1999 = smul.addr %s1998, 8
        %s2000 = scalar_lea.vmem %s7, %s1999
        // Predicated region
        $region53: #{tpu_custom_call.1} parent=43 // pred_check
          %p2001 = pneg %p174
        $region54: #{tpu_custom_call.1} parent=43 // pred_check_branch
          %2003 = sbr.rel (%p2001) target = $region56
        $region55: #{tpu_custom_call.1} parent=43 // pred_region
          _
        $region56: #{tpu_custom_call.1} parent=43 // pred_fallthru
          _
        // Predicated region
        $region57: #{tpu_custom_call.1} parent=43 // pred_check
          %p2004 = pneg %p200
        $region58: #{tpu_custom_call.1} parent=43 // pred_check_branch
          %2006 = sbr.rel (%p2004) target = $region60
        $region59: #{tpu_custom_call.1} parent=43 // pred_region
          _
        $region60: #{tpu_custom_call.1} parent=43 // pred_fallthru
          _
      $region44: #{tpu_custom_call.1} parent=5 // pred_fallthru
        _
      %p2007 = scmp.le.s32.totalorder 2, %s20
      // Predicated region
      $region61: #{tpu_custom_call.1} parent=5 // pred_check
        %p2008 = pneg %p2007
      $region62: #{tpu_custom_call.1} parent=5 // pred_check_branch
        %2010 = sbr.rel (%p2008) target = $region64
      $region63: #{tpu_custom_call.1} parent=5 // pred_region
        %s2011 = ssub.s32 %s20, 2
        // Predicated region
        $region65: #{tpu_custom_call.1} parent=63 // pred_check
          %p2012 = pneg %p180
        $region66: #{tpu_custom_call.1} parent=63 // pred_check_branch
          %2014 = sbr.rel (%p2012) target = $region68
        $region67: #{tpu_custom_call.1} parent=63 // pred_region
          %p2015 = scmp.lt.s32.totalorder %s26, 1
          %s2016 = scalar_select %p2015, %s26, 1
          %s2017 = scalar_lea.vmem %s6, %s2016
        $region68: #{tpu_custom_call.1} parent=63 // pred_fallthru
          _
        // Predicated region
        $region69: #{tpu_custom_call.1} parent=63 // pred_check
          %p2018 = pneg %p206
        $region70: #{tpu_custom_call.1} parent=63 // pred_check_branch
          %2020 = sbr.rel (%p2018) target = $region72
        $region71: #{tpu_custom_call.1} parent=63 // pred_region
          %p2021 = scmp.lt.s32.totalorder %s26, 1
          %s2022 = scalar_select %p2021, %s26, 1
          %s2023 = smul.addr %s2022, 8
          %s2024 = scalar_lea.vmem %s7, %s2023
        $region72: #{tpu_custom_call.1} parent=63 // pred_fallthru
          _
      $region64: #{tpu_custom_call.1} parent=5 // pred_fallthru
        _
    $region6: #{tpu_custom_call.1} parent=1 // loop_footer
      %s24 = sadd.s32 1, %s20
    $region7: #{tpu_custom_call.1} parent=1 // loop_footer_branch
      %19 = sbr.rel target = $region3
    $region8: #{tpu_custom_call.1} parent=1 // loop_exit
      _
    %2025 = vsyncpa [#allocation4], 1
    %s2026 = scalar_lea.sflag [#allocation4], 1
    %2027 = vsyncpa %s2026, 1
    %2028 = vsyncpa [#allocation6], 1

</llo_original>
